<compile_context>
chip_gen: v5e
topology: v5e:2x2
jax: 0.10.0
libtpu: 0.0.40
codegen_flags: <defaults>
</compile_context>

<pallas_src>
import functools

import jax
import jax.numpy as jnp
from jax import lax
from jax.experimental import pallas as pl
from jax.experimental.pallas import tpu as pltpu


LANE = 128                 # TPU vreg lane width
TARGET_TILE_PIXELS = 2048  # output pixels per spatial grid step (review item)


def _round_up(x, m):
    return ((x + m - 1) // m) * m


def _pick_row_tile(H, W):
    """Rows per spatial tile (TR) and number of tiles (T)."""
    tr = max(1, min(H, TARGET_TILE_PIXELS // max(W, 1)))
    # Keep backbone output row-blocks 8-aligned; fall back to a single tile.
    if (tr * W) % 8 != 0 and tr != H:
        tr = H
    t = pl.cdiv(H, tr)
    return tr, t


def _prep_input(x_nchw, tr, t):
    """NCHW f32 -> zero-padded NHWC bf16 [B, T*TR + 2, W + 2, C].

    Only the raw input (never a 9x im2col expansion) touches HBM; the 3x3
    patch extraction is fused into the kernels below.  The extra bottom rows
    (when TR does not divide H) are zeros and are masked out of the GAP.
    """
    B, C, H, W = x_nchw.shape
    x_nhwc = jnp.transpose(x_nchw, (0, 2, 3, 1)).astype(jnp.bfloat16)
    hp2 = t * tr + 2
    return jnp.pad(x_nhwc, ((0, 0), (1, hp2 - H - 1), (1, 1), (0, 0)))


# -----------------------------------------------------------------------------
# Fused kernel: in-VMEM im2col + conv-as-9-matmuls + bias + ReLU + GAP + head
# -----------------------------------------------------------------------------
def _fused_encoder_kernel(H, W, TR, T, x_ref, w_ref, b_ref, wh_ref, bh_ref,
                          feat_ref, out_ref, acc_ref):
    # x_ref   : [T*TR+2, W+2, C] bf16   (whole padded image, VMEM-resident per b)
    # w_ref   : [9, C, HPAD]     bf16   conv taps (dy*3+dx major)
    # b_ref   : [1, HPAD]        f32
    # wh_ref  : [HPAD, NPAD]     bf16
    # bh_ref  : [1, NPAD]        f32
    # feat_ref: [1, 1, HPAD]     f32    pooled features
    # out_ref : [1, 1, NPAD]     f32    logits
    # acc_ref : [1, HPAD]        f32    GAP accumulator (scratch)
    t = pl.program_id(1)
    C = w_ref.shape[1]
    hpad = w_ref.shape[2]

    @pl.when(t == 0)
    def _init():
        acc_ref[...] = jnp.zeros_like(acc_ref)

    # One dynamic row-slab load (TR output rows + 2 halo rows); all 9 taps are
    # static slices of this VMEM value -> no HBM patch tensor.
    row0 = t * TR
    xt = x_ref[pl.ds(row0, TR + 2), :, :]                  # [TR+2, W+2, C] bf16

    act = jnp.zeros((TR * W, hpad), jnp.float32)
    for k in range(9):                                     # unrolled 3x3 taps
        dy, dx = divmod(k, 3)
        slab = xt[dy:dy + TR, dx:dx + W, :].reshape(TR * W, C)
        act = act + jnp.dot(slab, w_ref[k],                # bf16 MXU, f32 acc
                            preferred_element_type=jnp.float32)

    act = jnp.maximum(act + b_ref[...], 0.0)               # bias + ReLU (f32)

    if H % TR == 0:
        # No ragged tile: plain accumulation every step (no mask anywhere).
        acc_ref[...] += jnp.sum(act, axis=0, keepdims=True)
    else:
        # Ragged last tile only pays for the mask (review item).
        @pl.when(t < T - 1)
        def _acc_full():
            acc_ref[...] += jnp.sum(act, axis=0, keepdims=True)

        @pl.when(t == T - 1)
        def _acc_masked():
            n_valid = (H - (T - 1) * TR) * W               # python int
            rows = lax.broadcasted_iota(jnp.int32, (TR * W, 1), 0)
            masked = jnp.where(rows < n_valid, act, 0.0)   # select, not mul
            acc_ref[...] += jnp.sum(masked, axis=0, keepdims=True)

    @pl.when(t == T - 1)
    def _finalize():
        pooled = acc_ref[...] * (1.0 / (H * W))            # [1, HPAD] f32
        feat_ref[0] = pooled.astype(feat_ref.dtype)
        logits = jnp.dot(pooled.astype(jnp.bfloat16), wh_ref[...],
                         preferred_element_type=jnp.float32) + bh_ref[...]
        out_ref[0] = logits.astype(out_ref.dtype)


def fused_encode(x_pad, conv_w9_p, conv_b_p, head_w_p, head_b_p, H, W, TR, T):
    """x_pad: [B, T*TR+2, W+2, C] bf16 -> (pooled [B,1,HPAD], logits [B,1,NPAD])."""
    B, HP2, WP, C = x_pad.shape
    HPAD = conv_w9_p.shape[-1]
    NPAD = head_w_p.shape[-1]
    hidden = HPAD  # padded; flops estimate below uses padded dims (advisory only)

    flops = 2 * B * H * W * C * 9 * hidden + 2 * B * hidden * NPAD
    bytes_accessed = (x_pad.size * 2 + conv_w9_p.size * 2 + conv_b_p.size * 4 +
                      head_w_p.size * 2 + head_b_p.size * 4 +
                      B * (HPAD + NPAD) * 4)

    feat, logits = pl.pallas_call(
        functools.partial(_fused_encoder_kernel, H, W, TR, T),
        out_shape=(jax.ShapeDtypeStruct((B, 1, HPAD), jnp.float32),
                   jax.ShapeDtypeStruct((B, 1, NPAD), jnp.float32)),
        grid_spec=pltpu.PrefetchScalarGridSpec(
            num_scalar_prefetch=0,
            grid=(B, T),
            in_specs=[
                # Whole padded image per batch, resident across the t axis.
                pl.BlockSpec((None, HP2, WP, C), lambda b, t: (b, 0, 0, 0)),
                pl.BlockSpec((9, C, HPAD), lambda b, t: (0, 0, 0)),
                pl.BlockSpec((1, HPAD), lambda b, t: (0, 0)),
                pl.BlockSpec((HPAD, NPAD), lambda b, t: (0, 0)),
                pl.BlockSpec((1, NPAD), lambda b, t: (0, 0)),
            ],
            out_specs=(
                pl.BlockSpec((1, 1, HPAD), lambda b, t: (b, 0, 0)),
                pl.BlockSpec((1, 1, NPAD), lambda b, t: (b, 0, 0)),
            ),
            scratch_shapes=[pltpu.VMEM((1, HPAD), jnp.float32)],
        ),
        compiler_params=pltpu.CompilerParams(
            dimension_semantics=("parallel", "arbitrary"),
            vmem_limit_bytes=32 * 1024 * 1024),
        cost_estimate=pl.CostEstimate(
            flops=flops, transcendentals=0, bytes_accessed=bytes_accessed),
    )(x_pad, conv_w9_p, conv_b_p, head_w_p, head_b_p)
    return feat, logits


# -----------------------------------------------------------------------------
# Backbone-only kernel (interface method `forward_backbone`): fused im2col,
# bf16 lane-dense feature-map writeback.
# -----------------------------------------------------------------------------
def _backbone_kernel(W, TR, x_ref, w_ref, b_ref, o_ref):
    t = pl.program_id(1)
    C = w_ref.shape[1]
    hpad = w_ref.shape[2]
    row0 = t * TR
    xt = x_ref[pl.ds(row0, TR + 2), :, :]                  # [TR+2, W+2, C] bf16
    act = jnp.zeros((TR * W, hpad), jnp.float32)
    for k in range(9):
        dy, dx = divmod(k, 3)
        slab = xt[dy:dy + TR, dx:dx + W, :].reshape(TR * W, C)
        act = act + jnp.dot(slab, w_ref[k],
                            preferred_element_type=jnp.float32)
    o_ref[0] = jnp.maximum(act + b_ref[...], 0.0).astype(o_ref.dtype)  # bf16


def backbone_fmap(x_pad, conv_w9_p, conv_b_p, W, TR, T):
    B, HP2, WP, C = x_pad.shape
    HPAD = conv_w9_p.shape[-1]
    return pl.pallas_call(
        functools.partial(_backbone_kernel, W, TR),
        out_shape=jax.ShapeDtypeStruct((B, T * TR * W, HPAD), jnp.bfloat16),
        grid_spec=pltpu.PrefetchScalarGridSpec(
            num_scalar_prefetch=0,
            grid=(B, T),
            in_specs=[
                pl.BlockSpec((None, HP2, WP, C), lambda b, t: (b, 0, 0, 0)),
                pl.BlockSpec((9, C, HPAD), lambda b, t: (0, 0, 0)),
                pl.BlockSpec((1, HPAD), lambda b, t: (0, 0)),
            ],
            out_specs=pl.BlockSpec((1, TR * W, HPAD), lambda b, t: (b, t, 0)),
        ),
        compiler_params=pltpu.CompilerParams(
            dimension_semantics=("parallel", "parallel"),
            vmem_limit_bytes=32 * 1024 * 1024),
    )(x_pad, conv_w9_p, conv_b_p)


# -----------------------------------------------------------------------------
# Standalone head kernel (interface method `forward_head`, lane-dense output)
# -----------------------------------------------------------------------------
def _head_kernel(f_ref, w_ref, b_ref, o_ref):
    logits = jnp.dot(f_ref[...].astype(jnp.bfloat16), w_ref[...],
                     preferred_element_type=jnp.float32) + b_ref[...]
    o_ref[...] = logits.astype(o_ref.dtype)


def head_logits(feat_pad, head_w_p, head_b_p):
    B, HPAD = feat_pad.shape
    _, NPAD = head_w_p.shape
    return pl.pallas_call(
        _head_kernel,
        out_shape=jax.ShapeDtypeStruct((B, NPAD), jnp.float32),
        grid=(1,),
        in_specs=[
            pl.BlockSpec((B, HPAD), lambda i: (0, 0)),
            pl.BlockSpec((HPAD, NPAD), lambda i: (0, 0)),
            pl.BlockSpec((1, NPAD), lambda i: (0, 0)),
        ],
        out_specs=pl.BlockSpec((B, NPAD), lambda i: (0, 0)),
        compiler_params=pltpu.CompilerParams(
            dimension_semantics=("arbitrary",)),
    )(feat_pad, head_w_p, head_b_p)


# -----------------------------------------------------------------------------
# Concrete Encoder mirroring the abstract PyTorch interface
# -----------------------------------------------------------------------------
class PallasConvEncoder:
    def __init__(self, in_channels=4, hidden=32, n_classes=8, key=None):
        if key is None:
            key = jax.random.PRNGKey(0)
        k1, k2, k3, k4 = jax.random.split(key, 4)
        self.in_channels = in_channels
        self.hidden = hidden
        self.n_classes = n_classes
        kdim = in_channels * 9

        # "Logical" parameters (mirror of torch parameter groups).
        self.conv_w = (jax.random.normal(k1, (3, 3, in_channels, hidden),
                                         jnp.float32) * (1.0 / jnp.sqrt(kdim)))
        self.conv_b = jax.random.normal(k2, (hidden,), jnp.float32) * 0.01
        self.head_w = (jax.random.normal(k3, (hidden, n_classes), jnp.float32)
                       * (1.0 / jnp.sqrt(hidden)))
        self.head_b = jax.random.normal(k4, (n_classes,), jnp.float32) * 0.01

        # Kernel-side packed parameters: N dims zero-padded to 128 lanes
        # (lane-dense stores, full MXU result lanes) and bf16 MXU inputs.
        # C / K deliberately NOT padded (bandwidth-bound; see header).
        self.hidden_pad = _round_up(hidden, LANE)
        self.n_classes_pad = _round_up(n_classes, LANE)
        hp, npad = self.hidden_pad, self.n_classes_pad
        w9 = self.conv_w.reshape(9, in_channels, hidden)
        self._conv_w_p = (jnp.zeros((9, in_channels, hp), jnp.float32)
                          .at[:, :, :hidden].set(w9).astype(jnp.bfloat16))
        self._conv_b_p = (jnp.zeros((1, hp), jnp.float32)
                          .at[0, :hidden].set(self.conv_b))
        self._head_w_p = (jnp.zeros((hp, npad), jnp.float32)
                          .at[:hidden, :n_classes].set(self.head_w)
                          .astype(jnp.bfloat16))
        self._head_b_p = (jnp.zeros((1, npad), jnp.float32)
                          .at[0, :n_classes].set(self.head_b))

    # ---- param groups (mirrors backbone_params / head_params) ---------------
    @property
    def backbone_params(self):
        return [self.conv_w, self.conv_b]

    @property
    def head_params(self):
        return [self.head_w, self.head_b]

    # ---- stages --------------------------------------------------------------
    def _prepped(self, x):
        B, C, H, W = x.shape
        tr, t = _pick_row_tile(H, W)
        return _prep_input(x, tr, t), H, W, tr, t

    def forward_backbone(self, x):
        """x: NCHW [B,C,H,W] -> feature map [B, H*W, hidden] (channels-last, bf16)."""
        x_pad, H, W, tr, t = self._prepped(x)
        fmap = backbone_fmap(x_pad, self._conv_w_p, self._conv_b_p, W, tr, t)
        return fmap[:, :H * W, :self.hidden]

    def forward_features(self, x):
        """Globally average-pooled features [B, hidden] (fused single pass)."""
        x_pad, H, W, tr, t = self._prepped(x)
        feat, _ = fused_encode(x_pad, self._conv_w_p, self._conv_b_p,
                               self._head_w_p, self._head_b_p, H, W, tr, t)
        return feat[:, 0, :self.hidden]

    def forward_head(self, feat):
        """feat: [B, hidden] -> logits [B, n_classes]."""
        pad = self.hidden_pad - feat.shape[-1]
        feat_pad = jnp.pad(feat.astype(jnp.float32), ((0, 0), (0, pad)))
        logits = head_logits(feat_pad, self._head_w_p, self._head_b_p)
        return logits[:, :self.n_classes]

    def forward(self, x):
        """Single fused pass: in-kernel im2col conv + ReLU + GAP + head."""
        x_pad, H, W, tr, t = self._prepped(x)
        _, logits = fused_encode(x_pad, self._conv_w_p, self._conv_b_p,
                                 self._head_w_p, self._head_b_p, H, W, tr, t)
        return logits[:, 0, :self.n_classes]

    __call__ = forward


# -----------------------------------------------------------------------------
# Reference (pure JAX, identical tap-wise bf16-in / f32-accumulate math)
# -----------------------------------------------------------------------------
def reference_forward(enc, x):
    B, C, H, W = x.shape
    x_nhwc = jnp.transpose(x, (0, 2, 3, 1)).astype(jnp.bfloat16)
    xp = jnp.pad(x_nhwc, ((0, 0), (1, 1), (1, 1), (0, 0)))
    w9 = enc.conv_w.reshape(9, C, enc.hidden).astype(jnp.bfloat16)
    act = jnp.zeros((B, H * W, enc.hidden), jnp.float32)
    for k in range(9):
        dy, dx = divmod(k, 3)
        slab = xp[:, dy:dy + H, dx:dx + W, :].reshape(B, H * W, C)
        act = act + jnp.einsum("bpc,co->bpo", slab, w9[k],
                               preferred_element_type=jnp.float32)
    act = jnp.maximum(act + enc.conv_b.reshape(1, 1, -1), 0.0)
    pooled = act.mean(axis=1)                                  # [B, hidden] f32
    logits = jnp.dot(pooled.astype(jnp.bfloat16),
                     enc.head_w.astype(jnp.bfloat16),
                     preferred_element_type=jnp.float32) + enc.head_b
    return logits


# -----------------------------------------------------------------------------
if __name__ == "__main__":
    key = jax.random.PRNGKey(0)
    kx, kp = jax.random.split(key)

    B, C, H, W = 2, 4, 16, 16                      # NCHW
    x = jax.random.normal(kx, (B, C, H, W), jnp.float32)

    enc = PallasConvEncoder(in_channels=C, hidden=32, n_classes=8, key=kp)

    logits = jax.block_until_ready(enc(x))
    ref = jax.block_until_ready(reference_forward(enc, x))

    assert logits.shape == (B, 8), logits.shape
    err = float(jnp.max(jnp.abs(logits - ref)))
    assert jnp.allclose(logits, ref, atol=2e-3, rtol=2e-3), f"max abs err {err}"

    # Interface consistency: head(features(x)) matches the fused forward, and
    # pooling the (bf16) backbone feature map matches forward_features.
    feats = jax.block_until_ready(enc.forward_features(x))
    logits2 = jax.block_until_ready(enc.forward_head(feats))
    fmap = jax.block_until_ready(enc.forward_backbone(x))
    assert jnp.allclose(logits2, logits, atol=2e-3, rtol=2e-3)
    assert jnp.allclose(fmap.astype(jnp.float32).mean(axis=1), feats,
                        atol=1e-2, rtol=1e-2)

    print("KERNEL_OK")
</pallas_src>

<mosaic_0001>
module attributes {stable_mosaic.version = 11 : i64} {
  func.func @_fused_encoder_kernel(%arg0: i32, %arg1: i32, %arg2: memref<1x18x18x4xbf16, #tpu.memory_space<vmem>>, %arg3: memref<9x4x128xbf16, #tpu.memory_space<vmem>>, %arg4: memref<1x128xf32, #tpu.memory_space<vmem>>, %arg5: memref<128x128xbf16, #tpu.memory_space<vmem>>, %arg6: memref<1x128xf32, #tpu.memory_space<vmem>>, %arg7: memref<1x1x128xf32, #tpu.memory_space<vmem>>, %arg8: memref<1x1x128xf32, #tpu.memory_space<vmem>>, %arg9: memref<1x128xf32, #tpu.memory_space<vmem>>) attributes {dimension_semantics = [#tpu.dimension_semantics<parallel>, #tpu.dimension_semantics<arbitrary>], iteration_bounds = array<i64: 2, 1>, scalar_prefetch = 0 : i64, scratch_operands = 1 : i64, tpu.core_type = #tpu.core_type<tc>, window_params = [{transform_indices = @transform_0, window_bounds = array<i64: 1, 18, 18, 4>}, {pipeline_mode = #tpu.pipeline_mode<synchronous>, transform_indices = @transform_1, window_bounds = array<i64: 9, 4, 128>}, {pipeline_mode = #tpu.pipeline_mode<synchronous>, transform_indices = @transform_2, window_bounds = array<i64: 1, 128>}, {pipeline_mode = #tpu.pipeline_mode<synchronous>, transform_indices = @transform_3, window_bounds = array<i64: 128, 128>}, {pipeline_mode = #tpu.pipeline_mode<synchronous>, transform_indices = @transform_4, window_bounds = array<i64: 1, 128>}, {transform_indices = @transform_5, window_bounds = array<i64: 1, 1, 128>}, {transform_indices = @transform_6, window_bounds = array<i64: 1, 1, 128>}]} {
    %c0_i32 = arith.constant 0 : i32
    %0 = arith.cmpi eq, %arg1, %c0_i32 : i32
    %1 = arith.extui %0 : i1 to i32
    %c0_i32_0 = arith.constant 0 : i32
    %2 = arith.cmpi ne, %1, %c0_i32_0 : i32
    scf.if %2 {
      %cst_41 = arith.constant 0.000000e+00 : f32
      %75 = vector.broadcast %cst_41 : f32 to vector<1x128xf32>
      %c0_42 = arith.constant 0 : index
      %c0_43 = arith.constant 0 : index
      %76 = vector.load %arg9[%c0_42, %c0_43] : memref<1x128xf32, #tpu.memory_space<vmem>>, vector<1x128xf32>
      tpu.vector_store %arg9[%c0_42, %c0_43], %75 {strides = array<i32>} : memref<1x128xf32, #tpu.memory_space<vmem>>, vector<1x128xf32>,
    } else {
    }
    %c16_i32 = arith.constant 16 : i32
    %3 = arith.muli %arg1, %c16_i32 : i32
    %c0 = arith.constant 0 : index
    %4 = arith.index_cast %3 : i32 to index
    %c0_1 = arith.constant 0 : index
    %c0_2 = arith.constant 0 : index
    %5 = vector.load %arg2[%c0, %4, %c0_1, %c0_2] : memref<1x18x18x4xbf16, #tpu.memory_space<vmem>>, vector<1x18x18x4xbf16>
    %6 = vector.shape_cast %5 : vector<1x18x18x4xbf16> to vector<18x18x4xbf16>
    %cst = arith.constant 0.000000e+00 : f32
    %7 = vector.broadcast %cst : f32 to vector<256x128xf32>
    %8 = vector.extract_strided_slice %6 {offsets = [0, 0, 0], sizes = [16, 16, 4], strides = [1, 1, 1]} : vector<18x18x4xbf16> to vector<16x16x4xbf16>
    %9 = vector.shape_cast %8 : vector<16x16x4xbf16> to vector<256x4xbf16>
    %c0_3 = arith.constant 0 : index
    %c0_4 = arith.constant 0 : index
    %c0_5 = arith.constant 0 : index
    %10 = vector.load %arg3[%c0_3, %c0_4, %c0_5] : memref<9x4x128xbf16, #tpu.memory_space<vmem>>, vector<1x4x128xbf16>
    %11 = vector.shape_cast %10 : vector<1x4x128xbf16> to vector<4x128xbf16>
    %cst_6 = arith.constant dense<0.000000e+00> : vector<256x128xf32>
    %12 = tpu.matmul %9, %11, %cst_6 {dimension_numbers = #tpu.dot_dimension_numbers<[1], [0], [0], [1], [0, 0, 1, 1], [], []>} : vector<256x4xbf16>, vector<4x128xbf16>, vector<256x128xf32> -> vector<256x128xf32>
    %13 = arith.addf %7, %12 : vector<256x128xf32>
    %14 = vector.extract_strided_slice %6 {offsets = [0, 1, 0], sizes = [16, 16, 4], strides = [1, 1, 1]} : vector<18x18x4xbf16> to vector<16x16x4xbf16>
    %15 = vector.shape_cast %14 : vector<16x16x4xbf16> to vector<256x4xbf16>
    %c1 = arith.constant 1 : index
    %c0_7 = arith.constant 0 : index
    %c0_8 = arith.constant 0 : index
    %16 = vector.load %arg3[%c1, %c0_7, %c0_8] : memref<9x4x128xbf16, #tpu.memory_space<vmem>>, vector<1x4x128xbf16>
    %17 = vector.shape_cast %16 : vector<1x4x128xbf16> to vector<4x128xbf16>
    %cst_9 = arith.constant dense<0.000000e+00> : vector<256x128xf32>
    %18 = tpu.matmul %15, %17, %cst_9 {dimension_numbers = #tpu.dot_dimension_numbers<[1], [0], [0], [1], [0, 0, 1, 1], [], []>} : vector<256x4xbf16>, vector<4x128xbf16>, vector<256x128xf32> -> vector<256x128xf32>
    %19 = arith.addf %13, %18 : vector<256x128xf32>
    %20 = vector.extract_strided_slice %6 {offsets = [0, 2, 0], sizes = [16, 16, 4], strides = [1, 1, 1]} : vector<18x18x4xbf16> to vector<16x16x4xbf16>
    %21 = vector.shape_cast %20 : vector<16x16x4xbf16> to vector<256x4xbf16>
    %c2 = arith.constant 2 : index
    %c0_10 = arith.constant 0 : index
    %c0_11 = arith.constant 0 : index
    %22 = vector.load %arg3[%c2, %c0_10, %c0_11] : memref<9x4x128xbf16, #tpu.memory_space<vmem>>, vector<1x4x128xbf16>
    %23 = vector.shape_cast %22 : vector<1x4x128xbf16> to vector<4x128xbf16>
    %cst_12 = arith.constant dense<0.000000e+00> : vector<256x128xf32>
    %24 = tpu.matmul %21, %23, %cst_12 {dimension_numbers = #tpu.dot_dimension_numbers<[1], [0], [0], [1], [0, 0, 1, 1], [], []>} : vector<256x4xbf16>, vector<4x128xbf16>, vector<256x128xf32> -> vector<256x128xf32>
    %25 = arith.addf %19, %24 : vector<256x128xf32>
    %26 = vector.extract_strided_slice %6 {offsets = [1, 0, 0], sizes = [16, 16, 4], strides = [1, 1, 1]} : vector<18x18x4xbf16> to vector<16x16x4xbf16>
    %27 = vector.shape_cast %26 : vector<16x16x4xbf16> to vector<256x4xbf16>
    %c3 = arith.constant 3 : index
    %c0_13 = arith.constant 0 : index
    %c0_14 = arith.constant 0 : index
    %28 = vector.load %arg3[%c3, %c0_13, %c0_14] : memref<9x4x128xbf16, #tpu.memory_space<vmem>>, vector<1x4x128xbf16>
    %29 = vector.shape_cast %28 : vector<1x4x128xbf16> to vector<4x128xbf16>
    %cst_15 = arith.constant dense<0.000000e+00> : vector<256x128xf32>
    %30 = tpu.matmul %27, %29, %cst_15 {dimension_numbers = #tpu.dot_dimension_numbers<[1], [0], [0], [1], [0, 0, 1, 1], [], []>} : vector<256x4xbf16>, vector<4x128xbf16>, vector<256x128xf32> -> vector<256x128xf32>
    %31 = arith.addf %25, %30 : vector<256x128xf32>
    %32 = vector.extract_strided_slice %6 {offsets = [1, 1, 0], sizes = [16, 16, 4], strides = [1, 1, 1]} : vector<18x18x4xbf16> to vector<16x16x4xbf16>
    %33 = vector.shape_cast %32 : vector<16x16x4xbf16> to vector<256x4xbf16>
    %c4 = arith.constant 4 : index
    %c0_16 = arith.constant 0 : index
    %c0_17 = arith.constant 0 : index
    %34 = vector.load %arg3[%c4, %c0_16, %c0_17] : memref<9x4x128xbf16, #tpu.memory_space<vmem>>, vector<1x4x128xbf16>
    %35 = vector.shape_cast %34 : vector<1x4x128xbf16> to vector<4x128xbf16>
    %cst_18 = arith.constant dense<0.000000e+00> : vector<256x128xf32>
    %36 = tpu.matmul %33, %35, %cst_18 {dimension_numbers = #tpu.dot_dimension_numbers<[1], [0], [0], [1], [0, 0, 1, 1], [], []>} : vector<256x4xbf16>, vector<4x128xbf16>, vector<256x128xf32> -> vector<256x128xf32>
    %37 = arith.addf %31, %36 : vector<256x128xf32>
    %38 = vector.extract_strided_slice %6 {offsets = [1, 2, 0], sizes = [16, 16, 4], strides = [1, 1, 1]} : vector<18x18x4xbf16> to vector<16x16x4xbf16>
    %39 = vector.shape_cast %38 : vector<16x16x4xbf16> to vector<256x4xbf16>
    %c5 = arith.constant 5 : index
    %c0_19 = arith.constant 0 : index
    %c0_20 = arith.constant 0 : index
    %40 = vector.load %arg3[%c5, %c0_19, %c0_20] : memref<9x4x128xbf16, #tpu.memory_space<vmem>>, vector<1x4x128xbf16>
    %41 = vector.shape_cast %40 : vector<1x4x128xbf16> to vector<4x128xbf16>
    %cst_21 = arith.constant dense<0.000000e+00> : vector<256x128xf32>
    %42 = tpu.matmul %39, %41, %cst_21 {dimension_numbers = #tpu.dot_dimension_numbers<[1], [0], [0], [1], [0, 0, 1, 1], [], []>} : vector<256x4xbf16>, vector<4x128xbf16>, vector<256x128xf32> -> vector<256x128xf32>
    %43 = arith.addf %37, %42 : vector<256x128xf32>
    %44 = vector.extract_strided_slice %6 {offsets = [2, 0, 0], sizes = [16, 16, 4], strides = [1, 1, 1]} : vector<18x18x4xbf16> to vector<16x16x4xbf16>
    %45 = vector.shape_cast %44 : vector<16x16x4xbf16> to vector<256x4xbf16>
    %c6 = arith.constant 6 : index
    %c0_22 = arith.constant 0 : index
    %c0_23 = arith.constant 0 : index
    %46 = vector.load %arg3[%c6, %c0_22, %c0_23] : memref<9x4x128xbf16, #tpu.memory_space<vmem>>, vector<1x4x128xbf16>
    %47 = vector.shape_cast %46 : vector<1x4x128xbf16> to vector<4x128xbf16>
    %cst_24 = arith.constant dense<0.000000e+00> : vector<256x128xf32>
    %48 = tpu.matmul %45, %47, %cst_24 {dimension_numbers = #tpu.dot_dimension_numbers<[1], [0], [0], [1], [0, 0, 1, 1], [], []>} : vector<256x4xbf16>, vector<4x128xbf16>, vector<256x128xf32> -> vector<256x128xf32>
    %49 = arith.addf %43, %48 : vector<256x128xf32>
    %50 = vector.extract_strided_slice %6 {offsets = [2, 1, 0], sizes = [16, 16, 4], strides = [1, 1, 1]} : vector<18x18x4xbf16> to vector<16x16x4xbf16>
    %51 = vector.shape_cast %50 : vector<16x16x4xbf16> to vector<256x4xbf16>
    %c7 = arith.constant 7 : index
    %c0_25 = arith.constant 0 : index
    %c0_26 = arith.constant 0 : index
    %52 = vector.load %arg3[%c7, %c0_25, %c0_26] : memref<9x4x128xbf16, #tpu.memory_space<vmem>>, vector<1x4x128xbf16>
    %53 = vector.shape_cast %52 : vector<1x4x128xbf16> to vector<4x128xbf16>
    %cst_27 = arith.constant dense<0.000000e+00> : vector<256x128xf32>
    %54 = tpu.matmul %51, %53, %cst_27 {dimension_numbers = #tpu.dot_dimension_numbers<[1], [0], [0], [1], [0, 0, 1, 1], [], []>} : vector<256x4xbf16>, vector<4x128xbf16>, vector<256x128xf32> -> vector<256x128xf32>
    %55 = arith.addf %49, %54 : vector<256x128xf32>
    %56 = vector.extract_strided_slice %6 {offsets = [2, 2, 0], sizes = [16, 16, 4], strides = [1, 1, 1]} : vector<18x18x4xbf16> to vector<16x16x4xbf16>
    %57 = vector.shape_cast %56 : vector<16x16x4xbf16> to vector<256x4xbf16>
    %c8 = arith.constant 8 : index
    %c0_28 = arith.constant 0 : index
    %c0_29 = arith.constant 0 : index
    %58 = vector.load %arg3[%c8, %c0_28, %c0_29] : memref<9x4x128xbf16, #tpu.memory_space<vmem>>, vector<1x4x128xbf16>
    %59 = vector.shape_cast %58 : vector<1x4x128xbf16> to vector<4x128xbf16>
    %cst_30 = arith.constant dense<0.000000e+00> : vector<256x128xf32>
    %60 = tpu.matmul %57, %59, %cst_30 {dimension_numbers = #tpu.dot_dimension_numbers<[1], [0], [0], [1], [0, 0, 1, 1], [], []>} : vector<256x4xbf16>, vector<4x128xbf16>, vector<256x128xf32> -> vector<256x128xf32>
    %61 = arith.addf %55, %60 : vector<256x128xf32>
    %c0_31 = arith.constant 0 : index
    %c0_32 = arith.constant 0 : index
    %62 = vector.load %arg4[%c0_31, %c0_32] : memref<1x128xf32, #tpu.memory_space<vmem>>, vector<1x128xf32>
    %63 = vector.broadcast %62 : vector<1x128xf32> to vector<256x128xf32>
    %64 = arith.addf %61, %63 : vector<256x128xf32>
    %cst_33 = arith.constant 0.000000e+00 : f32
    %65 = vector.broadcast %cst_33 : f32 to vector<256x128xf32>
    %66 = arith.maximumf %64, %65 : vector<256x128xf32>
    %c0_34 = arith.constant 0 : index
    %c0_35 = arith.constant 0 : index
    %67 = vector.load %arg9[%c0_34, %c0_35] : memref<1x128xf32, #tpu.memory_space<vmem>>, vector<1x128xf32>
    %cst_36 = arith.constant dense<0.000000e+00> : vector<128xf32>
    %68 = vector.multi_reduction <add>, %66, %cst_36 [0] : vector<256x128xf32> to vector<128xf32>
    %69 = vector.shape_cast %68 : vector<128xf32> to vector<1x128xf32>
    %70 = arith.addf %67, %69 : vector<1x128xf32>
    %c0_37 = arith.constant 0 : index
    %c0_38 = arith.constant 0 : index
    %71 = vector.load %arg9[%c0_37, %c0_38] : memref<1x128xf32, #tpu.memory_space<vmem>>, vector<1x128xf32>
    tpu.vector_store %arg9[%c0_37, %c0_38], %70 {strides = array<i32>} : memref<1x128xf32, #tpu.memory_space<vmem>>, vector<1x128xf32>,
    %c0_i32_39 = arith.constant 0 : i32
    %72 = arith.cmpi eq, %arg1, %c0_i32_39 : i32
    %73 = arith.extui %72 : i1 to i32
    %c0_i32_40 = arith.constant 0 : i32
    %74 = arith.cmpi ne, %73, %c0_i32_40 : i32
    scf.if %74 {
      %c0_41 = arith.constant 0 : index
      %c0_42 = arith.constant 0 : index
      %75 = vector.load %arg9[%c0_41, %c0_42] : memref<1x128xf32, #tpu.memory_space<vmem>>, vector<1x128xf32>
      %cst_43 = arith.constant 3.906250e-03 : f32
      %76 = vector.broadcast %cst_43 : f32 to vector<1x128xf32>
      %77 = arith.mulf %75, %76 : vector<1x128xf32>
      %c0_44 = arith.constant 0 : index
      %c0_45 = arith.constant 0 : index
      %c0_46 = arith.constant 0 : index
      %78 = vector.load %arg7[%c0_44, %c0_45, %c0_46] : memref<1x1x128xf32, #tpu.memory_space<vmem>>, vector<1x1x128xf32>
      %79 = vector.shape_cast %78 : vector<1x1x128xf32> to vector<1x128xf32>
      %80 = vector.shape_cast %77 : vector<1x128xf32> to vector<1x1x128xf32>
      tpu.vector_store %arg7[%c0_44, %c0_45, %c0_46], %80 {strides = array<i32>} : memref<1x1x128xf32, #tpu.memory_space<vmem>>, vector<1x1x128xf32>,
      %81 = arith.truncf %77 : vector<1x128xf32> to vector<1x128xbf16>
      %c0_47 = arith.constant 0 : index
      %c0_48 = arith.constant 0 : index
      %82 = vector.load %arg5[%c0_47, %c0_48] : memref<128x128xbf16, #tpu.memory_space<vmem>>, vector<128x128xbf16>
      %cst_49 = arith.constant dense<0.000000e+00> : vector<1x128xf32>
      %83 = tpu.matmul %81, %82, %cst_49 {dimension_numbers = #tpu.dot_dimension_numbers<[1], [0], [0], [1], [0, 0, 1, 1], [], []>} : vector<1x128xbf16>, vector<128x128xbf16>, vector<1x128xf32> -> vector<1x128xf32>
      %c0_50 = arith.constant 0 : index
      %c0_51 = arith.constant 0 : index
      %84 = vector.load %arg6[%c0_50, %c0_51] : memref<1x128xf32, #tpu.memory_space<vmem>>, vector<1x128xf32>
      %85 = arith.addf %83, %84 : vector<1x128xf32>
      %c0_52 = arith.constant 0 : index
      %c0_53 = arith.constant 0 : index
      %c0_54 = arith.constant 0 : index
      %86 = vector.load %arg8[%c0_52, %c0_53, %c0_54] : memref<1x1x128xf32, #tpu.memory_space<vmem>>, vector<1x1x128xf32>
      %87 = vector.shape_cast %86 : vector<1x1x128xf32> to vector<1x128xf32>
      %88 = vector.shape_cast %85 : vector<1x128xf32> to vector<1x1x128xf32>
      tpu.vector_store %arg8[%c0_52, %c0_53, %c0_54], %88 {strides = array<i32>} : memref<1x1x128xf32, #tpu.memory_space<vmem>>, vector<1x1x128xf32>,
    } else {
    }
    return
  }
  func.func @transform_0(%arg0: i32, %arg1: i32) -> (i32, i32, i32, i32) {
    %c0_i32 = arith.constant 0 : i32
    %c0_i32_0 = arith.constant 0 : i32
    %c0_i32_1 = arith.constant 0 : i32
    %c0_i32_2 = arith.constant 0 : i32
    return %arg0, %c0_i32, %c0_i32_0, %c0_i32_1 : i32, i32, i32, i32
  }
  func.func @transform_1(%arg0: i32, %arg1: i32) -> (i32, i32, i32) {
    %c0_i32 = arith.constant 0 : i32
    %c0_i32_0 = arith.constant 0 : i32
    %c0_i32_1 = arith.constant 0 : i32
    %c0_i32_2 = arith.constant 0 : i32
    return %c0_i32, %c0_i32_0, %c0_i32_1 : i32, i32, i32
  }
  func.func @transform_2(%arg0: i32, %arg1: i32) -> (i32, i32) {
    %c0_i32 = arith.constant 0 : i32
    %c0_i32_0 = arith.constant 0 : i32
    %c0_i32_1 = arith.constant 0 : i32
    return %c0_i32, %c0_i32_0 : i32, i32
  }
  func.func @transform_3(%arg0: i32, %arg1: i32) -> (i32, i32) {
    %c0_i32 = arith.constant 0 : i32
    %c0_i32_0 = arith.constant 0 : i32
    %c0_i32_1 = arith.constant 0 : i32
    return %c0_i32, %c0_i32_0 : i32, i32
  }
  func.func @transform_4(%arg0: i32, %arg1: i32) -> (i32, i32) {
    %c0_i32 = arith.constant 0 : i32
    %c0_i32_0 = arith.constant 0 : i32
    %c0_i32_1 = arith.constant 0 : i32
    return %c0_i32, %c0_i32_0 : i32, i32
  }
  func.func @transform_5(%arg0: i32, %arg1: i32) -> (i32, i32, i32) {
    %c0_i32 = arith.constant 0 : i32
    %c0_i32_0 = arith.constant 0 : i32
    %c0_i32_1 = arith.constant 0 : i32
    return %arg0, %c0_i32, %c0_i32_0 : i32, i32, i32
  }
  func.func @transform_6(%arg0: i32, %arg1: i32) -> (i32, i32, i32) {
    %c0_i32 = arith.constant 0 : i32
    %c0_i32_0 = arith.constant 0 : i32
    %c0_i32_1 = arith.constant 0 : i32
    return %arg0, %c0_i32, %c0_i32_0 : i32, i32, i32
  }
}

</mosaic_0001>

<llo_original>
// kernel: tpu_custom_call.1
$region0: #{tpu_custom_call.1}
  #allocation0 [shape = 'u32[]', space=smem, size = 0x4, offset = 0x4, fixed_abs, tag = 'smem constant byte address 0x4 - core index']
  #allocation1 [shape = 'u32[72,128]{1,0:T(1,128)}', space=vmem, size = 0x9000, scoped, tag = 'internal scratch']
  #allocation2 [shape = 'f32[1,128]{1,0:T(1,128)}', space=vmem, size = 0x200, scoped, tag = 'scratch operand']
  %s0 = inlined_call_operand.vmem [shape: bf16[2,18,18,4], index: 0, kind: input, shape index: {}]
  %s1 = inlined_call_operand.vmem [shape: bf16[9,4,128], index: 1, kind: input, shape index: {}]
  %s2 = inlined_call_operand.vmem [shape: f32[1,128], index: 2, kind: input, shape index: {}]
  %s3 = inlined_call_operand.vmem [shape: bf16[128,128], index: 3, kind: input, shape index: {}]
  %s4 = inlined_call_operand.vmem [shape: f32[1,128], index: 4, kind: input, shape index: {}]
  %s5 = inlined_call_operand.hbm [shape: f32[2,1,128], index: 5, kind: output, shape index: {0}]
  %s6 = inlined_call_operand.hbm [shape: f32[2,1,128], index: 6, kind: output, shape index: {1}]
  %7 = xla_tuple %s5, %s6
  %s8 = sld [smem:[#allocation0]]
  $region69: #{tpu_custom_call.1} parent=0
    _
  %s10 = ssub.s32 1, %s8
  %s11 = scalar_select 0, %s10, %s8
  $region1: #{tpu_custom_call.1} parent=0
    #allocation3 [shape = 'u8[1024]{0}', space=vmem, size = 0x400, scoped, tag = 'output window, operand 0']
    #allocation4 [shape = 's32[2]{0}', space=sflag, size = 0x8, scoped, tag = 'scoped memory for tpu_custom_call.1']
    #allocation5 [shape = 'u8[1024]{0}', space=vmem, size = 0x400, scoped, tag = 'output window, operand 1']
    #allocation6 [shape = 's32[2]{0}', space=sflag, size = 0x8, scoped, tag = 'scoped memory for tpu_custom_call.1']
    %12 = vsyncpa [#allocation4], 0
    %s13 = scalar_lea.sflag [#allocation4], 1
    %14 = vsyncpa %s13, 0
    %15 = vsyncpa [#allocation6], 0
    %s16 = scalar_lea.sflag [#allocation6], 1
    %17 = vsyncpa %s16, 0
    loop: start=0, step=1, limit=4
    $region2: #{tpu_custom_call.1} parent=1 // loop_pre_header
      _
    $region3: #{tpu_custom_call.1} parent=1 // loop_header
      %s19 = sphi 0, %s23
      %p20 = scmp.ge.s32.totalorder %s19, 4
      %s26 = sphi 0, %s38
      %s27 = sphi 0, %s34
      %s28 = sphi 0, %s26
      %s29 = sphi 0, %s27
      %s30 = sphi 0, %s28
      %s31 = sphi 0, %s29
      %s41 = sphi 0, %s43
      %s44 = sphi 0, %s41
      %s45 = sphi 0, %s44
      %s61 = sphi 0, %s45
      %s65 = sphi 0, %s65
      %s67 = sphi 0, %s65
      %s68 = sphi 0, %s67
      %s82 = sphi 0, %s68
      %s86 = sphi 0, %s86
      %s88 = sphi 0, %s86
      %s89 = sphi 0, %s88
      %s103 = sphi 0, %s89
      %s107 = sphi 0, %s107
      %s109 = sphi 0, %s107
      %s110 = sphi 0, %s109
      %s124 = sphi 0, %s110
      %s128 = sphi 0, %s128
      %s130 = sphi 0, %s128
      %s131 = sphi 0, %s130
      %s145 = sphi 0, %s131
      %s151 = sphi 0, %s153
      %s154 = sphi 0, %s151
      %s155 = sphi 0, %s154
      %s171 = sphi 0, %s155
      %s177 = sphi 0, %s179
      %s180 = sphi 0, %s177
      %s181 = sphi 0, %s180
      %s197 = sphi 0, %s181
    $region4: #{tpu_custom_call.1} parent=1 // loop_header_branch
      %22 = sbr.rel (%p20) target = $region8
    $region5: #{tpu_custom_call.1} parent=1 // loop_body
      %s24 = ssub.s32 %s19, 1
      %s25 = ssub.s32 %s19, 2
      %s32 = sadd.s32 1, %s27
      %p33 = scmp.ge.s32.totalorder %s32, 1
      %s34 = scalar_select %p33, 0, %s32
      %s35 = sadd.s32 1, %s26
      %s36 = scalar_select %p33, %s35, %s26
      %p37 = scmp.ge.s32.totalorder %s36, 2
      %s38 = scalar_select %p37, 0, %s36
      %s39 = ssub.s32 %s26, %s38
      %p40 = scmp.eq.s32.totalorder %s39, 0
      %s42 = sadd.s32 %s41, 1
      %s43 = scalar_select %p40, %s41, %s42
      %p46 = pneg %p40
      %p47 = scmp.eq.s32.totalorder %s19, 1
      %p48 = por %p46, %p47
      %p49 = scmp.ne.s32.totalorder %s41, %s44
      %p50 = scmp.eq.s32.totalorder %s19, 0
      %p51 = por %p49, %p50
      %p52 = scmp.ne.s32.totalorder %s41, %s44
      %p53 = scmp.eq.s32.totalorder %s24, 1
      %p54 = por %p52, %p53
      %p55 = scmp.ne.s32.totalorder %s44, %s45
      %p56 = scmp.eq.s32.totalorder %s24, 0
      %p57 = por %p55, %p56
      %p58 = scmp.ne.s32.totalorder %s44, %s45
      %p59 = scmp.eq.s32.totalorder %s25, 1
      %p60 = por %p58, %p59
      %p62 = scmp.ne.s32.totalorder %s45, %s61
      %p63 = scmp.eq.s32.totalorder %s25, 0
      %p64 = por %p62, %p63
      %s66 = sadd.s32 %s65, 1
      %p69 = scmp.eq.s32.totalorder %s19, 1
      %p70 = scmp.ne.s32.totalorder %s65, %s67
      %p71 = scmp.eq.s32.totalorder %s19, 0
      %p72 = por %p70, %p71
      %p73 = scmp.ne.s32.totalorder %s65, %s67
      %p74 = scmp.eq.s32.totalorder %s24, 1
      %p75 = por %p73, %p74
      %p76 = scmp.ne.s32.totalorder %s67, %s68
      %p77 = scmp.eq.s32.totalorder %s24, 0
      %p78 = por %p76, %p77
      %p79 = scmp.ne.s32.totalorder %s67, %s68
      %p80 = scmp.eq.s32.totalorder %s25, 1
      %p81 = por %p79, %p80
      %p83 = scmp.ne.s32.totalorder %s68, %s82
      %p84 = scmp.eq.s32.totalorder %s25, 0
      %p85 = por %p83, %p84
      %s87 = sadd.s32 %s86, 1
      %p90 = scmp.eq.s32.totalorder %s19, 1
      %p91 = scmp.ne.s32.totalorder %s86, %s88
      %p92 = scmp.eq.s32.totalorder %s19, 0
      %p93 = por %p91, %p92
      %p94 = scmp.ne.s32.totalorder %s86, %s88
      %p95 = scmp.eq.s32.totalorder %s24, 1
      %p96 = por %p94, %p95
      %p97 = scmp.ne.s32.totalorder %s88, %s89
      %p98 = scmp.eq.s32.totalorder %s24, 0
      %p99 = por %p97, %p98
      %p100 = scmp.ne.s32.totalorder %s88, %s89
      %p101 = scmp.eq.s32.totalorder %s25, 1
      %p102 = por %p100, %p101
      %p104 = scmp.ne.s32.totalorder %s89, %s103
      %p105 = scmp.eq.s32.totalorder %s25, 0
      %p106 = por %p104, %p105
      %s108 = sadd.s32 %s107, 1
      %p111 = scmp.eq.s32.totalorder %s19, 1
      %p112 = scmp.ne.s32.totalorder %s107, %s109
      %p113 = scmp.eq.s32.totalorder %s19, 0
      %p114 = por %p112, %p113
      %p115 = scmp.ne.s32.totalorder %s107, %s109
      %p116 = scmp.eq.s32.totalorder %s24, 1
      %p117 = por %p115, %p116
      %p118 = scmp.ne.s32.totalorder %s109, %s110
      %p119 = scmp.eq.s32.totalorder %s24, 0
      %p120 = por %p118, %p119
      %p121 = scmp.ne.s32.totalorder %s109, %s110
      %p122 = scmp.eq.s32.totalorder %s25, 1
      %p123 = por %p121, %p122
      %p125 = scmp.ne.s32.totalorder %s110, %s124
      %p126 = scmp.eq.s32.totalorder %s25, 0
      %p127 = por %p125, %p126
      %s129 = sadd.s32 %s128, 1
      %p132 = scmp.eq.s32.totalorder %s19, 1
      %p133 = scmp.ne.s32.totalorder %s128, %s130
      %p134 = scmp.eq.s32.totalorder %s19, 0
      %p135 = por %p133, %p134
      %p136 = scmp.ne.s32.totalorder %s128, %s130
      %p137 = scmp.eq.s32.totalorder %s24, 1
      %p138 = por %p136, %p137
      %p139 = scmp.ne.s32.totalorder %s130, %s131
      %p140 = scmp.eq.s32.totalorder %s24, 0
      %p141 = por %p139, %p140
      %p142 = scmp.ne.s32.totalorder %s130, %s131
      %p143 = scmp.eq.s32.totalorder %s25, 1
      %p144 = por %p142, %p143
      %p146 = scmp.ne.s32.totalorder %s131, %s145
      %p147 = scmp.eq.s32.totalorder %s25, 0
      %p148 = por %p146, %p147
      %s149 = ssub.s32 %s26, %s38
      %p150 = scmp.eq.s32.totalorder %s149, 0
      %s152 = sadd.s32 %s151, 1
      %s153 = scalar_select %p150, %s151, %s152
      %p156 = pneg %p150
      %p157 = scmp.eq.s32.totalorder %s19, 1
      %p158 = por %p156, %p157
      %p159 = scmp.ne.s32.totalorder %s151, %s154
      %p160 = scmp.eq.s32.totalorder %s19, 0
      %p161 = por %p159, %p160
      %p162 = scmp.ne.s32.totalorder %s151, %s154
      %p163 = scmp.eq.s32.totalorder %s24, 1
      %p164 = por %p162, %p163
      %p165 = scmp.ne.s32.totalorder %s154, %s155
      %p166 = scmp.eq.s32.totalorder %s24, 0
      %p167 = por %p165, %p166
      %p168 = scmp.ne.s32.totalorder %s154, %s155
      %p169 = scmp.eq.s32.totalorder %s25, 1
      %p170 = por %p168, %p169
      %p172 = scmp.ne.s32.totalorder %s155, %s171
      %p173 = scmp.eq.s32.totalorder %s25, 0
      %p174 = por %p172, %p173
      %s175 = ssub.s32 %s26, %s38
      %p176 = scmp.eq.s32.totalorder %s175, 0
      %s178 = sadd.s32 %s177, 1
      %s179 = scalar_select %p176, %s177, %s178
      %p182 = pneg %p176
      %p183 = scmp.eq.s32.totalorder %s19, 1
      %p184 = por %p182, %p183
      %p185 = scmp.ne.s32.totalorder %s177, %s180
      %p186 = scmp.eq.s32.totalorder %s19, 0
      %p187 = por %p185, %p186
      %p188 = scmp.ne.s32.totalorder %s177, %s180
      %p189 = scmp.eq.s32.totalorder %s24, 1
      %p190 = por %p188, %p189
      %p191 = scmp.ne.s32.totalorder %s180, %s181
      %p192 = scmp.eq.s32.totalorder %s24, 0
      %p193 = por %p191, %p192
      %p194 = scmp.ne.s32.totalorder %s180, %s181
      %p195 = scmp.eq.s32.totalorder %s25, 1
      %p196 = por %p194, %p195
      %p198 = scmp.ne.s32.totalorder %s181, %s197
      %p199 = scmp.eq.s32.totalorder %s25, 0
      %p200 = por %p198, %p199
      %p201 = scmp.le.s32.totalorder 1, %s19
      %p202 = scmp.lt.s32.totalorder %s19, 3
      %p203 = pnand %p201, %p202
      %p204 = pneg %p203
      // Predicated region
      $region9: #{tpu_custom_call.1} parent=5 // pred_check
        _
      $region10: #{tpu_custom_call.1} parent=5 // pred_check_branch
        %206 = sbr.rel (%p203) target = $region12
      $region11: #{tpu_custom_call.1} parent=5 // pred_region
        %s207 = ssub.s32 %s19, 1
        // Predicated region
        $region13: #{tpu_custom_call.1} parent=11 // pred_check
          %p208 = pneg %p78
        $region14: #{tpu_custom_call.1} parent=11 // pred_check_branch
          %210 = sbr.rel (%p208) target = $region16
        $region15: #{tpu_custom_call.1} parent=11 // pred_region
          _
        $region16: #{tpu_custom_call.1} parent=11 // pred_fallthru
          _
        // Predicated region
        $region17: #{tpu_custom_call.1} parent=11 // pred_check
          %p211 = pneg %p99
        $region18: #{tpu_custom_call.1} parent=11 // pred_check_branch
          %213 = sbr.rel (%p211) target = $region20
        $region19: #{tpu_custom_call.1} parent=11 // pred_region
          _
        $region20: #{tpu_custom_call.1} parent=11 // pred_fallthru
          _
        // Predicated region
        $region21: #{tpu_custom_call.1} parent=11 // pred_check
          %p214 = pneg %p120
        $region22: #{tpu_custom_call.1} parent=11 // pred_check_branch
          %216 = sbr.rel (%p214) target = $region24
        $region23: #{tpu_custom_call.1} parent=11 // pred_region
          _
        $region24: #{tpu_custom_call.1} parent=11 // pred_fallthru
          _
        // Predicated region
        $region25: #{tpu_custom_call.1} parent=11 // pred_check
          %p217 = pneg %p141
        $region26: #{tpu_custom_call.1} parent=11 // pred_check_branch
          %219 = sbr.rel (%p217) target = $region28
        $region27: #{tpu_custom_call.1} parent=11 // pred_region
          _
        $region28: #{tpu_custom_call.1} parent=11 // pred_fallthru
          _
      $region12: #{tpu_custom_call.1} parent=5 // pred_fallthru
        _
      %p220 = scmp.lt.s32.totalorder %s19, 2
      // Predicated region
      $region29: #{tpu_custom_call.1} parent=5 // pred_check
        %p221 = pneg %p220
      $region30: #{tpu_custom_call.1} parent=5 // pred_check_branch
        %223 = sbr.rel (%p221) target = $region32
      $region31: #{tpu_custom_call.1} parent=5 // pred_region
        // Predicated region
        $region33: #{tpu_custom_call.1} parent=31 // pred_check
          %p224 = pneg %p51
        $region34: #{tpu_custom_call.1} parent=31 // pred_check_branch
          %226 = sbr.rel (%p224) target = $region36
        $region35: #{tpu_custom_call.1} parent=31 // pred_region
          %p227 = scmp.lt.s32.totalorder %s26, 1
          %s228 = scalar_select %p227, %s26, 1
          %s229 = smul.addr %s228, 54
          %s230 = smul.addr %s229, 4
          %s231 = scalar_lea.vmem %s0, %s230
        $region36: #{tpu_custom_call.1} parent=31 // pred_fallthru
          _
      $region32: #{tpu_custom_call.1} parent=5 // pred_fallthru
        _
      %p232 = scmp.le.s32.totalorder 1, %s19
      %p233 = scmp.lt.s32.totalorder %s19, 3
      %p234 = pnand %p232, %p233
      %p235 = pneg %p234
      // Predicated region
      $region37: #{tpu_custom_call.1} parent=5 // pred_check
        _
      $region38: #{tpu_custom_call.1} parent=5 // pred_check_branch
        %237 = sbr.rel (%p234) target = $region40
      $region39: #{tpu_custom_call.1} parent=5 // pred_region
        %s238 = ssub.s32 %s19, 1
        %p239 = scmp.lt.s32.totalorder %s28, 1
        %s240 = scalar_select %p239, %s28, 1
        %s241 = smul.addr %s240, 54
        %s242 = smul.addr %s241, 4
        %s243 = scalar_lea.vmem %s0, %s242
        %p244 = pneg %p57
        %p245 = pneg %p54
        %p246 = pneg %p78
        %p247 = pneg %p75
        %p248 = pneg %p99
        %p249 = pneg %p96
        %p250 = pneg %p120
        %p251 = pneg %p117
        %p252 = pneg %p141
        %p253 = pneg %p138
        %p254 = pneg %p167
        %p255 = pneg %p164
        %s256 = sand.u32 %s154, 1
        %s257 = scalar_lea.sflag [#allocation4], %s256
        %s258 = sand.u32 %s154, 1
        %s259 = scalar_lea.vmem [#allocation3], %s258
        %p260 = pneg %p193
        %p261 = pneg %p190
        %s262 = sand.u32 %s180, 1
        %s263 = scalar_lea.sflag [#allocation6], %s262
        %s264 = sand.u32 %s180, 1
        %s265 = scalar_lea.vmem [#allocation5], %s264
        %p266 = scmp.lt.s32.totalorder %s28, 1
        %s267 = scalar_select %p266, %s28, 1
        %s268 = smul.addr %s267, 54
        %s269 = smul.addr %s268, 4
        %s270 = scalar_lea.vmem %s0, %s269
        %p272 = scmp.eq.s32.totalorder %s29, 0
        // Predicated region
        $region41: #{tpu_custom_call.1} parent=39 // pred_check
          %p273 = pneg %p272
        $region42: #{tpu_custom_call.1} parent=39 // pred_check_branch
          %275 = sbr.rel (%p273) target = $region44
        $region43: #{tpu_custom_call.1} parent=39 // pred_region
          %276 = vst [vmem:[#allocation2] sm:$0x1] 0.0
        $region44: #{tpu_custom_call.1} parent=39 // pred_fallthru
          _
        %s277 = smul.u32 %s29, 16
        %s278 = smul.u32 %s277, 3
        %s279 = smul.addr %s278, 4
        %s280 = scalar_lea.vmem %s270, %s279
        %v281 = vld [vmem:[%s280] sm:$0xf]
        %v282 = vld [vmem:[%s280 + $0x4] sm:$0xf]
        %v283 = vld [vmem:[%s280 + $0x8] sm:$0x1]
        %v284 = vld [vmem:[%s280 + $0xc] sm:$0xf]
        %v285 = vld [vmem:[%s280 + $0x10] sm:$0xf]
        %v286 = vld [vmem:[%s280 + $0x14] sm:$0x1]
        %v287 = vld [vmem:[%s280 + $0x18] sm:$0xf]
        %v288 = vld [vmem:[%s280 + $0x1c] sm:$0xf]
        %v289 = vld [vmem:[%s280 + $0x20] sm:$0x1]
        %v290 = vld [vmem:[%s280 + $0x24] sm:$0xf]
        %v291 = vld [vmem:[%s280 + $0x28] sm:$0xf]
        %v292 = vld [vmem:[%s280 + $0x2c] sm:$0x1]
        %v293 = vld [vmem:[%s280 + $0x30] sm:$0xf]
        %v294 = vld [vmem:[%s280 + $0x34] sm:$0xf]
        %v295 = vld [vmem:[%s280 + $0x38] sm:$0x1]
        %v296 = vld [vmem:[%s280 + $0x3c] sm:$0xf]
        %v297 = vld [vmem:[%s280 + $0x40] sm:$0xf]
        %v298 = vld [vmem:[%s280 + $0x44] sm:$0x1]
        %v299 = vld [vmem:[%s280 + $0x48] sm:$0xf]
        %v300 = vld [vmem:[%s280 + $0x4c] sm:$0xf]
        %v301 = vld [vmem:[%s280 + $0x50] sm:$0x1]
        %v302 = vld [vmem:[%s280 + $0x54] sm:$0xf]
        %v303 = vld [vmem:[%s280 + $0x58] sm:$0xf]
        %v304 = vld [vmem:[%s280 + $0x5c] sm:$0x1]
        %v305 = vld [vmem:[%s280 + $0x60] sm:$0xf]
        %v306 = vld [vmem:[%s280 + $0x64] sm:$0xf]
        %v307 = vld [vmem:[%s280 + $0x68] sm:$0x1]
        %v308 = vld [vmem:[%s280 + $0x6c] sm:$0xf]
        %v309 = vld [vmem:[%s280 + $0x70] sm:$0xf]
        %v310 = vld [vmem:[%s280 + $0x74] sm:$0x1]
        %v311 = vld [vmem:[%s280 + $0x78] sm:$0xf]
        %v312 = vld [vmem:[%s280 + $0x7c] sm:$0xf]
        %v313 = vld [vmem:[%s280 + $0x80] sm:$0x1]
        %v314 = vld [vmem:[%s280 + $0x84] sm:$0xf]
        %v315 = vld [vmem:[%s280 + $0x88] sm:$0xf]
        %v316 = vld [vmem:[%s280 + $0x8c] sm:$0x1]
        %v317 = vld [vmem:[%s280 + $0x90] sm:$0xf]
        %v318 = vld [vmem:[%s280 + $0x94] sm:$0xf]
        %v319 = vld [vmem:[%s280 + $0x98] sm:$0x1]
        %v320 = vld [vmem:[%s280 + $0x9c] sm:$0xf]
        %v321 = vld [vmem:[%s280 + $0xa0] sm:$0xf]
        %v322 = vld [vmem:[%s280 + $0xa4] sm:$0x1]
        %v323 = vld [vmem:[%s280 + $0xa8] sm:$0xf]
        %v324 = vld [vmem:[%s280 + $0xac] sm:$0xf]
        %v325 = vld [vmem:[%s280 + $0xb0] sm:$0x1]
        %v326 = vld [vmem:[%s280 + $0xb4] sm:$0xf]
        %v327 = vld [vmem:[%s280 + $0xb8] sm:$0xf]
        %v328 = vld [vmem:[%s280 + $0xbc] sm:$0x1]
        %v329 = vld [vmem:[%s280 + $0xc0] sm:$0xf]
        %v330 = vld [vmem:[%s280 + $0xc4] sm:$0xf]
        %v331 = vld [vmem:[%s280 + $0xc8] sm:$0x1]
        %v332 = vld [vmem:[%s280 + $0xcc] sm:$0xf]
        %v333 = vld [vmem:[%s280 + $0xd0] sm:$0xf]
        %v334 = vld [vmem:[%s280 + $0xd4] sm:$0x1]
        %v335 = vld [vmem:[%s1] sm:$0x3]
        %vm336 = vsmask.f32 3328
        %vm337 = vsmask.f32 7440
        %vm338 = vmor %vm336, %vm337
        %v340 = vshrl.u32 %v281, 16
        %v342 = vrot.slane %v340, 4
        %v343 = vshll.u32 %v281, 16
        %v345 = vrot.slane %v343, 5
        %v346 = vor.u32 %v342, %v345
        %v347 = vrot.slane %v346, 4
        %v349 = vshll.u32 %v282, 16
        %v351 = vrot.slane %v349, 5
        %v352 = vsel %vm338, %v347, %v351
        %v353 = vshrl.u32 %v282, 16
        %v355 = vrot.slane %v353, 4
        %v356 = vor.u32 %v355, %v351
        %v357 = vrot.slane %v356, 4
        %v359 = vshll.u32 %v283, 16
        %v361 = vrot.slane %v359, 5
        %v362 = vsel %vm338, %v357, %v361
        %v364 = vshrl.u32 %v284, 16
        %v366 = vrot.slane %v364, 4
        %v367 = vshll.u32 %v284, 16
        %v369 = vrot.slane %v367, 5
        %v370 = vor.u32 %v366, %v369
        %v371 = vrot.slane %v370, 4
        %v373 = vshll.u32 %v285, 16
        %v375 = vrot.slane %v373, 5
        %v376 = vsel %vm338, %v371, %v375
        %v377 = vshrl.u32 %v285, 16
        %v379 = vrot.slane %v377, 4
        %v380 = vor.u32 %v379, %v375
        %v381 = vrot.slane %v380, 4
        %v383 = vshll.u32 %v286, 16
        %v385 = vrot.slane %v383, 5
        %v386 = vsel %vm338, %v381, %v385
        %v388 = vshrl.u32 %v287, 16
        %v390 = vrot.slane %v388, 4
        %v391 = vshll.u32 %v287, 16
        %v393 = vrot.slane %v391, 5
        %v394 = vor.u32 %v390, %v393
        %v395 = vrot.slane %v394, 4
        %v397 = vshll.u32 %v288, 16
        %v399 = vrot.slane %v397, 5
        %v400 = vsel %vm338, %v395, %v399
        %v401 = vshrl.u32 %v288, 16
        %v403 = vrot.slane %v401, 4
        %v404 = vor.u32 %v403, %v399
        %v405 = vrot.slane %v404, 4
        %v407 = vshll.u32 %v289, 16
        %v409 = vrot.slane %v407, 5
        %v410 = vsel %vm338, %v405, %v409
        %v412 = vshrl.u32 %v290, 16
        %v414 = vrot.slane %v412, 4
        %v415 = vshll.u32 %v290, 16
        %v417 = vrot.slane %v415, 5
        %v418 = vor.u32 %v414, %v417
        %v419 = vrot.slane %v418, 4
        %v421 = vshll.u32 %v291, 16
        %v423 = vrot.slane %v421, 5
        %v424 = vsel %vm338, %v419, %v423
        %v425 = vshrl.u32 %v291, 16
        %v427 = vrot.slane %v425, 4
        %v428 = vor.u32 %v427, %v423
        %v429 = vrot.slane %v428, 4
        %v431 = vshll.u32 %v292, 16
        %v433 = vrot.slane %v431, 5
        %v434 = vsel %vm338, %v429, %v433
        %v436 = vshrl.u32 %v293, 16
        %v438 = vrot.slane %v436, 4
        %v439 = vshll.u32 %v293, 16
        %v441 = vrot.slane %v439, 5
        %v442 = vor.u32 %v438, %v441
        %v443 = vrot.slane %v442, 4
        %v445 = vshll.u32 %v294, 16
        %v447 = vrot.slane %v445, 5
        %v448 = vsel %vm338, %v443, %v447
        %v449 = vshrl.u32 %v294, 16
        %v451 = vrot.slane %v449, 4
        %v452 = vor.u32 %v451, %v447
        %v453 = vrot.slane %v452, 4
        %v455 = vshll.u32 %v295, 16
        %v457 = vrot.slane %v455, 5
        %v458 = vsel %vm338, %v453, %v457
        %v460 = vshrl.u32 %v296, 16
        %v462 = vrot.slane %v460, 4
        %v463 = vshll.u32 %v296, 16
        %v465 = vrot.slane %v463, 5
        %v466 = vor.u32 %v462, %v465
        %v467 = vrot.slane %v466, 4
        %v469 = vshll.u32 %v297, 16
        %v471 = vrot.slane %v469, 5
        %v472 = vsel %vm338, %v467, %v471
        %v473 = vshrl.u32 %v297, 16
        %v475 = vrot.slane %v473, 4
        %v476 = vor.u32 %v475, %v471
        %v477 = vrot.slane %v476, 4
        %v479 = vshll.u32 %v298, 16
        %v481 = vrot.slane %v479, 5
        %v482 = vsel %vm338, %v477, %v481
        %v484 = vshrl.u32 %v299, 16
        %v486 = vrot.slane %v484, 4
        %v487 = vshll.u32 %v299, 16
        %v489 = vrot.slane %v487, 5
        %v490 = vor.u32 %v486, %v489
        %v491 = vrot.slane %v490, 4
        %v493 = vshll.u32 %v300, 16
        %v495 = vrot.slane %v493, 5
        %v496 = vsel %vm338, %v491, %v495
        %v497 = vshrl.u32 %v300, 16
        %v499 = vrot.slane %v497, 4
        %v500 = vor.u32 %v499, %v495
        %v501 = vrot.slane %v500, 4
        %v503 = vshll.u32 %v301, 16
        %v505 = vrot.slane %v503, 5
        %v506 = vsel %vm338, %v501, %v505
        %v508 = vshrl.u32 %v302, 16
        %v510 = vrot.slane %v508, 4
        %v511 = vshll.u32 %v302, 16
        %v513 = vrot.slane %v511, 5
        %v514 = vor.u32 %v510, %v513
        %v515 = vrot.slane %v514, 4
        %v517 = vshll.u32 %v303, 16
        %v519 = vrot.slane %v517, 5
        %v520 = vsel %vm338, %v515, %v519
        %v521 = vshrl.u32 %v303, 16
        %v523 = vrot.slane %v521, 4
        %v524 = vor.u32 %v523, %v519
        %v525 = vrot.slane %v524, 4
        %v527 = vshll.u32 %v304, 16
        %v529 = vrot.slane %v527, 5
        %v530 = vsel %vm338, %v525, %v529
        %v532 = vshrl.u32 %v305, 16
        %v534 = vrot.slane %v532, 4
        %v535 = vshll.u32 %v305, 16
        %v537 = vrot.slane %v535, 5
        %v538 = vor.u32 %v534, %v537
        %v539 = vrot.slane %v538, 4
        %v541 = vshll.u32 %v306, 16
        %v543 = vrot.slane %v541, 5
        %v544 = vsel %vm338, %v539, %v543
        %v545 = vshrl.u32 %v306, 16
        %v547 = vrot.slane %v545, 4
        %v548 = vor.u32 %v547, %v543
        %v549 = vrot.slane %v548, 4
        %v551 = vshll.u32 %v307, 16
        %v553 = vrot.slane %v551, 5
        %v554 = vsel %vm338, %v549, %v553
        %v556 = vshrl.u32 %v308, 16
        %v558 = vrot.slane %v556, 4
        %v559 = vshll.u32 %v308, 16
        %v561 = vrot.slane %v559, 5
        %v562 = vor.u32 %v558, %v561
        %v563 = vrot.slane %v562, 4
        %v565 = vshll.u32 %v309, 16
        %v567 = vrot.slane %v565, 5
        %v568 = vsel %vm338, %v563, %v567
        %v569 = vshrl.u32 %v309, 16
        %v571 = vrot.slane %v569, 4
        %v572 = vor.u32 %v571, %v567
        %v573 = vrot.slane %v572, 4
        %v575 = vshll.u32 %v310, 16
        %v577 = vrot.slane %v575, 5
        %v578 = vsel %vm338, %v573, %v577
        %v580 = vshrl.u32 %v311, 16
        %v582 = vrot.slane %v580, 4
        %v583 = vshll.u32 %v311, 16
        %v585 = vrot.slane %v583, 5
        %v586 = vor.u32 %v582, %v585
        %v587 = vrot.slane %v586, 4
        %v589 = vshll.u32 %v312, 16
        %v591 = vrot.slane %v589, 5
        %v592 = vsel %vm338, %v587, %v591
        %v593 = vshrl.u32 %v312, 16
        %v595 = vrot.slane %v593, 4
        %v596 = vor.u32 %v595, %v591
        %v597 = vrot.slane %v596, 4
        %v599 = vshll.u32 %v313, 16
        %v601 = vrot.slane %v599, 5
        %v602 = vsel %vm338, %v597, %v601
        %v604 = vshrl.u32 %v314, 16
        %v606 = vrot.slane %v604, 4
        %v607 = vshll.u32 %v314, 16
        %v609 = vrot.slane %v607, 5
        %v610 = vor.u32 %v606, %v609
        %v611 = vrot.slane %v610, 4
        %v613 = vshll.u32 %v315, 16
        %v615 = vrot.slane %v613, 5
        %v616 = vsel %vm338, %v611, %v615
        %v617 = vshrl.u32 %v315, 16
        %v619 = vrot.slane %v617, 4
        %v620 = vor.u32 %v619, %v615
        %v621 = vrot.slane %v620, 4
        %v623 = vshll.u32 %v316, 16
        %v625 = vrot.slane %v623, 5
        %v626 = vsel %vm338, %v621, %v625
        %v628 = vshrl.u32 %v317, 16
        %v630 = vrot.slane %v628, 4
        %v631 = vshll.u32 %v317, 16
        %v633 = vrot.slane %v631, 5
        %v634 = vor.u32 %v630, %v633
        %v635 = vrot.slane %v634, 4
        %v637 = vshll.u32 %v318, 16
        %v639 = vrot.slane %v637, 5
        %v640 = vsel %vm338, %v635, %v639
        %v641 = vshrl.u32 %v318, 16
        %v643 = vrot.slane %v641, 4
        %v644 = vor.u32 %v643, %v639
        %v645 = vrot.slane %v644, 4
        %v647 = vshll.u32 %v319, 16
        %v649 = vrot.slane %v647, 5
        %v650 = vsel %vm338, %v645, %v649
        %v652 = vshrl.u32 %v320, 16
        %v654 = vrot.slane %v652, 4
        %v655 = vshll.u32 %v320, 16
        %v657 = vrot.slane %v655, 5
        %v658 = vor.u32 %v654, %v657
        %v659 = vrot.slane %v658, 4
        %v661 = vshll.u32 %v321, 16
        %v663 = vrot.slane %v661, 5
        %v664 = vsel %vm338, %v659, %v663
        %v665 = vshrl.u32 %v321, 16
        %v667 = vrot.slane %v665, 4
        %v668 = vor.u32 %v667, %v663
        %v669 = vrot.slane %v668, 4
        %v671 = vshll.u32 %v322, 16
        %v673 = vrot.slane %v671, 5
        %v674 = vsel %vm338, %v669, %v673
        %v676 = vshrl.u32 %v323, 16
        %v678 = vrot.slane %v676, 4
        %v679 = vshll.u32 %v323, 16
        %v681 = vrot.slane %v679, 5
        %v682 = vor.u32 %v678, %v681
        %v683 = vrot.slane %v682, 4
        %v685 = vshll.u32 %v324, 16
        %v687 = vrot.slane %v685, 5
        %v688 = vsel %vm338, %v683, %v687
        %v689 = vshrl.u32 %v324, 16
        %v691 = vrot.slane %v689, 4
        %v692 = vor.u32 %v691, %v687
        %v693 = vrot.slane %v692, 4
        %v695 = vshll.u32 %v325, 16
        %v697 = vrot.slane %v695, 5
        %v698 = vsel %vm338, %v693, %v697
        %v700 = vshrl.u32 %v326, 16
        %v702 = vrot.slane %v700, 4
        %v703 = vshll.u32 %v326, 16
        %v705 = vrot.slane %v703, 5
        %v706 = vor.u32 %v702, %v705
        %v707 = vrot.slane %v706, 4
        %v709 = vshll.u32 %v327, 16
        %v711 = vrot.slane %v709, 5
        %v712 = vsel %vm338, %v707, %v711
        %v713 = vshrl.u32 %v327, 16
        %v715 = vrot.slane %v713, 4
        %v716 = vor.u32 %v715, %v711
        %v717 = vrot.slane %v716, 4
        %v719 = vshll.u32 %v328, 16
        %v721 = vrot.slane %v719, 5
        %v722 = vsel %vm338, %v717, %v721
        %s723 = scalar_lea.vmem %s1, 2
        %v724 = vld [vmem:[%s723] sm:$0x3]
        %v725 = vunpack.c.l.b16 %v352
        %v726 = vunpack.c.l.b16 %v362
        %v727 = vunpack.c.l.b16 %v376
        %v728 = vunpack.c.l.b16 %v386
        %v729 = vunpack.c.l.b16 %v400
        %v730 = vunpack.c.l.b16 %v410
        %v731 = vunpack.c.l.b16 %v424
        %v732 = vunpack.c.l.b16 %v434
        %v733 = vunpack.c.l.b16 %v448
        %v734 = vunpack.c.l.b16 %v458
        %v735 = vunpack.c.l.b16 %v472
        %v736 = vunpack.c.l.b16 %v482
        %v737 = vunpack.c.l.b16 %v496
        %v738 = vunpack.c.l.b16 %v506
        %v739 = vunpack.c.l.b16 %v520
        %v740 = vunpack.c.l.b16 %v530
        %v741 = vunpack.c.l.b16 %v544
        %v742 = vunpack.c.l.b16 %v554
        %v743 = vunpack.c.l.b16 %v568
        %v744 = vunpack.c.l.b16 %v578
        %v745 = vunpack.c.l.b16 %v592
        %v746 = vunpack.c.l.b16 %v602
        %v747 = vunpack.c.l.b16 %v616
        %v748 = vunpack.c.l.b16 %v626
        %v749 = vunpack.c.l.b16 %v640
        %v750 = vunpack.c.l.b16 %v650
        %v751 = vunpack.c.l.b16 %v664
        %v752 = vunpack.c.l.b16 %v674
        %v753 = vunpack.c.l.b16 %v688
        %v754 = vunpack.c.l.b16 %v698
        %v755 = vunpack.c.l.b16 %v712
        %v756 = vunpack.c.l.b16 %v722
        %v757 = vpack.c.b16 %v726, %v725
        %v758 = vpack.c.b16 %v728, %v727
        %v759 = vpack.c.b16 %v730, %v729
        %v760 = vpack.c.b16 %v732, %v731
        %v761 = vpack.c.b16 %v734, %v733
        %v762 = vpack.c.b16 %v736, %v735
        %v763 = vpack.c.b16 %v738, %v737
        %v764 = vpack.c.b16 %v740, %v739
        %v765 = vpack.c.b16 %v742, %v741
        %v766 = vpack.c.b16 %v744, %v743
        %v767 = vpack.c.b16 %v746, %v745
        %v768 = vpack.c.b16 %v748, %v747
        %v769 = vpack.c.b16 %v750, %v749
        %v770 = vpack.c.b16 %v752, %v751
        %v771 = vpack.c.b16 %v754, %v753
        %v772 = vpack.c.b16 %v756, %v755
        %vm773 = vcmask 31744
        %v775 = vsel %vm773, %v757, 0
        %v778 = vsel %vm773, %v758, 0
        %v781 = vsel %vm773, %v759, 0
        %v784 = vsel %vm773, %v760, 0
        %v787 = vsel %vm773, %v761, 0
        %v790 = vsel %vm773, %v762, 0
        %v793 = vsel %vm773, %v763, 0
        %v796 = vsel %vm773, %v764, 0
        %v799 = vsel %vm773, %v765, 0
        %v802 = vsel %vm773, %v766, 0
        %v805 = vsel %vm773, %v767, 0
        %v808 = vsel %vm773, %v768, 0
        %v811 = vsel %vm773, %v769, 0
        %v814 = vsel %vm773, %v770, 0
        %v817 = vsel %vm773, %v771, 0
        %v820 = vsel %vm773, %v772, 0
        %vm822 = vcmask 1041408
        %v824 = vsel %vm822, %v724, 0
        %826 = vmatpush.bf16.msra.mxu0 0
        %827 = vmatpush.bf16.msra.mxu0 0
        %828 = vmatpush.bf16.msra.mxu0 0
        %829 = vmatpush.bf16.msra.mxu0 0
        %830 = vmatpush.bf16.msra.mxu0 0
        %831 = vmatpush.bf16.msra.mxu0 0
        %832 = vmatpush.bf16.msra.mxu0 0
        %833 = vmatpush.bf16.msra.mxu0 %v824
        %834 = vmatmul.bf16.gmra.mxu0 %v775
        %v835 = vpop.f32.mrf.mxu0
        %v836 = vadd.f32 0.0, %v835
        %v837 = vpop.f32.mrf.mxu0
        %v838 = vadd.f32 0.0, %v837
        %839 = vmatmul.bf16.gmra.mxu0 %v778
        %v840 = vpop.f32.mrf.mxu0
        %v841 = vadd.f32 0.0, %v840
        %v842 = vpop.f32.mrf.mxu0
        %v843 = vadd.f32 0.0, %v842
        %844 = vmatmul.bf16.gmra.mxu0 %v781
        %v845 = vpop.f32.mrf.mxu0
        %v846 = vadd.f32 0.0, %v845
        %v847 = vpop.f32.mrf.mxu0
        %v848 = vadd.f32 0.0, %v847
        %849 = vmatmul.bf16.gmra.mxu0 %v784
        %v850 = vpop.f32.mrf.mxu0
        %v851 = vadd.f32 0.0, %v850
        %v852 = vpop.f32.mrf.mxu0
        %v853 = vadd.f32 0.0, %v852
        %854 = vmatmul.bf16.gmra.mxu0 %v787
        %v855 = vpop.f32.mrf.mxu0
        %v856 = vadd.f32 0.0, %v855
        %v857 = vpop.f32.mrf.mxu0
        %v858 = vadd.f32 0.0, %v857
        %859 = vmatmul.bf16.gmra.mxu0 %v790
        %v860 = vpop.f32.mrf.mxu0
        %v861 = vadd.f32 0.0, %v860
        %v862 = vpop.f32.mrf.mxu0
        %v863 = vadd.f32 0.0, %v862
        %864 = vmatmul.bf16.gmra.mxu0 %v793
        %v865 = vpop.f32.mrf.mxu0
        %v866 = vadd.f32 0.0, %v865
        %v867 = vpop.f32.mrf.mxu0
        %v868 = vadd.f32 0.0, %v867
        %869 = vmatmul.bf16.gmra.mxu0 %v796
        %v870 = vpop.f32.mrf.mxu0
        %v871 = vadd.f32 0.0, %v870
        %v872 = vpop.f32.mrf.mxu0
        %v873 = vadd.f32 0.0, %v872
        %874 = vmatmul.bf16.gmra.mxu0 %v799
        %v875 = vpop.f32.mrf.mxu0
        %v876 = vadd.f32 0.0, %v875
        %v877 = vpop.f32.mrf.mxu0
        %v878 = vadd.f32 0.0, %v877
        %879 = vmatmul.bf16.gmra.mxu0 %v802
        %v880 = vpop.f32.mrf.mxu0
        %v881 = vadd.f32 0.0, %v880
        %v882 = vpop.f32.mrf.mxu0
        %v883 = vadd.f32 0.0, %v882
        %884 = vmatmul.bf16.gmra.mxu0 %v805
        %v885 = vpop.f32.mrf.mxu0
        %v886 = vadd.f32 0.0, %v885
        %v887 = vpop.f32.mrf.mxu0
        %v888 = vadd.f32 0.0, %v887
        %889 = vmatmul.bf16.gmra.mxu0 %v808
        %v890 = vpop.f32.mrf.mxu0
        %v891 = vadd.f32 0.0, %v890
        %v892 = vpop.f32.mrf.mxu0
        %v893 = vadd.f32 0.0, %v892
        %894 = vmatmul.bf16.gmra.mxu0 %v811
        %v895 = vpop.f32.mrf.mxu0
        %v896 = vadd.f32 0.0, %v895
        %v897 = vpop.f32.mrf.mxu0
        %v898 = vadd.f32 0.0, %v897
        %899 = vmatmul.bf16.gmra.mxu0 %v814
        %v900 = vpop.f32.mrf.mxu0
        %v901 = vadd.f32 0.0, %v900
        %v902 = vpop.f32.mrf.mxu0
        %v903 = vadd.f32 0.0, %v902
        %904 = vmatmul.bf16.gmra.mxu0 %v817
        %v905 = vpop.f32.mrf.mxu0
        %v906 = vadd.f32 0.0, %v905
        %v907 = vpop.f32.mrf.mxu0
        %v908 = vadd.f32 0.0, %v907
        %909 = vmatmul.bf16.gmra.mxu0 %v820
        %v910 = vpop.f32.mrf.mxu0
        %v911 = vadd.f32 0.0, %v910
        %v912 = vpop.f32.mrf.mxu0
        %v913 = vadd.f32 0.0, %v912
        %914 = vdwg.mxu0
        %v947 = vunpack.c.l.b16 %v281
        %v948 = vunpack.c.l.b16 %v282
        %v949 = vunpack.c.l.b16 %v284
        %v950 = vunpack.c.l.b16 %v285
        %v951 = vunpack.c.l.b16 %v287
        %v952 = vunpack.c.l.b16 %v288
        %v953 = vunpack.c.l.b16 %v290
        %v954 = vunpack.c.l.b16 %v291
        %v955 = vunpack.c.l.b16 %v293
        %v956 = vunpack.c.l.b16 %v294
        %v957 = vunpack.c.l.b16 %v296
        %v958 = vunpack.c.l.b16 %v297
        %v959 = vunpack.c.l.b16 %v299
        %v960 = vunpack.c.l.b16 %v300
        %v961 = vunpack.c.l.b16 %v302
        %v962 = vunpack.c.l.b16 %v303
        %v963 = vunpack.c.l.b16 %v305
        %v964 = vunpack.c.l.b16 %v306
        %v965 = vunpack.c.l.b16 %v308
        %v966 = vunpack.c.l.b16 %v309
        %v967 = vunpack.c.l.b16 %v311
        %v968 = vunpack.c.l.b16 %v312
        %v969 = vunpack.c.l.b16 %v314
        %v970 = vunpack.c.l.b16 %v315
        %v971 = vunpack.c.l.b16 %v317
        %v972 = vunpack.c.l.b16 %v318
        %v973 = vunpack.c.l.b16 %v320
        %v974 = vunpack.c.l.b16 %v321
        %v975 = vunpack.c.l.b16 %v323
        %v976 = vunpack.c.l.b16 %v324
        %v977 = vunpack.c.l.b16 %v326
        %v978 = vunpack.c.l.b16 %v327
        %v979 = vpack.c.b16 %v948, %v947
        %v980 = vpack.c.b16 %v950, %v949
        %v981 = vpack.c.b16 %v952, %v951
        %v982 = vpack.c.b16 %v954, %v953
        %v983 = vpack.c.b16 %v956, %v955
        %v984 = vpack.c.b16 %v958, %v957
        %v985 = vpack.c.b16 %v960, %v959
        %v986 = vpack.c.b16 %v962, %v961
        %v987 = vpack.c.b16 %v964, %v963
        %v988 = vpack.c.b16 %v966, %v965
        %v989 = vpack.c.b16 %v968, %v967
        %v990 = vpack.c.b16 %v970, %v969
        %v991 = vpack.c.b16 %v972, %v971
        %v992 = vpack.c.b16 %v974, %v973
        %v993 = vpack.c.b16 %v976, %v975
        %v994 = vpack.c.b16 %v978, %v977
        %v996 = vsel %vm773, %v979, 0
        %v999 = vsel %vm773, %v980, 0
        %v1002 = vsel %vm773, %v981, 0
        %v1005 = vsel %vm773, %v982, 0
        %v1008 = vsel %vm773, %v983, 0
        %v1011 = vsel %vm773, %v984, 0
        %v1014 = vsel %vm773, %v985, 0
        %v1017 = vsel %vm773, %v986, 0
        %v1020 = vsel %vm773, %v987, 0
        %v1023 = vsel %vm773, %v988, 0
        %v1026 = vsel %vm773, %v989, 0
        %v1029 = vsel %vm773, %v990, 0
        %v1032 = vsel %vm773, %v991, 0
        %v1035 = vsel %vm773, %v992, 0
        %v1038 = vsel %vm773, %v993, 0
        %v1041 = vsel %vm773, %v994, 0
        %v1044 = vsel %vm822, %v335, 0
        %1046 = vmatpush.bf16.msra.mxu0 0
        %1047 = vmatpush.bf16.msra.mxu0 0
        %1048 = vmatpush.bf16.msra.mxu0 0
        %1049 = vmatpush.bf16.msra.mxu0 0
        %1050 = vmatpush.bf16.msra.mxu0 0
        %1051 = vmatpush.bf16.msra.mxu0 0
        %1052 = vmatpush.bf16.msra.mxu0 0
        %1053 = vmatpush.bf16.msra.mxu0 %v1044
        %1054 = vmatmul.bf16.gmra.mxu0 %v996
        %v1055 = vpop.f32.mrf.mxu0
        %v1056 = vadd.f32 %v836, %v1055
        %v1057 = vpop.f32.mrf.mxu0
        %v1058 = vadd.f32 %v838, %v1057
        %1059 = vmatmul.bf16.gmra.mxu0 %v999
        %v1060 = vpop.f32.mrf.mxu0
        %v1061 = vadd.f32 %v841, %v1060
        %v1062 = vpop.f32.mrf.mxu0
        %v1063 = vadd.f32 %v843, %v1062
        %1064 = vmatmul.bf16.gmra.mxu0 %v1002
        %v1065 = vpop.f32.mrf.mxu0
        %v1066 = vadd.f32 %v846, %v1065
        %v1067 = vpop.f32.mrf.mxu0
        %v1068 = vadd.f32 %v848, %v1067
        %1069 = vmatmul.bf16.gmra.mxu0 %v1005
        %v1070 = vpop.f32.mrf.mxu0
        %v1071 = vadd.f32 %v851, %v1070
        %v1072 = vpop.f32.mrf.mxu0
        %v1073 = vadd.f32 %v853, %v1072
        %1074 = vmatmul.bf16.gmra.mxu0 %v1008
        %v1075 = vpop.f32.mrf.mxu0
        %v1076 = vadd.f32 %v856, %v1075
        %v1077 = vpop.f32.mrf.mxu0
        %v1078 = vadd.f32 %v858, %v1077
        %1079 = vmatmul.bf16.gmra.mxu0 %v1011
        %v1080 = vpop.f32.mrf.mxu0
        %v1081 = vadd.f32 %v861, %v1080
        %v1082 = vpop.f32.mrf.mxu0
        %v1083 = vadd.f32 %v863, %v1082
        %1084 = vmatmul.bf16.gmra.mxu0 %v1014
        %v1085 = vpop.f32.mrf.mxu0
        %v1086 = vadd.f32 %v866, %v1085
        %v1087 = vpop.f32.mrf.mxu0
        %v1088 = vadd.f32 %v868, %v1087
        %1089 = vmatmul.bf16.gmra.mxu0 %v1017
        %v1090 = vpop.f32.mrf.mxu0
        %v1091 = vadd.f32 %v871, %v1090
        %v1092 = vpop.f32.mrf.mxu0
        %v1093 = vadd.f32 %v873, %v1092
        %1094 = vmatmul.bf16.gmra.mxu0 %v1020
        %v1095 = vpop.f32.mrf.mxu0
        %v1096 = vadd.f32 %v876, %v1095
        %v1097 = vpop.f32.mrf.mxu0
        %v1098 = vadd.f32 %v878, %v1097
        %1099 = vmatmul.bf16.gmra.mxu0 %v1023
        %v1100 = vpop.f32.mrf.mxu0
        %v1101 = vadd.f32 %v881, %v1100
        %v1102 = vpop.f32.mrf.mxu0
        %v1103 = vadd.f32 %v883, %v1102
        %1104 = vmatmul.bf16.gmra.mxu0 %v1026
        %v1105 = vpop.f32.mrf.mxu0
        %v1106 = vadd.f32 %v886, %v1105
        %v1107 = vpop.f32.mrf.mxu0
        %v1108 = vadd.f32 %v888, %v1107
        %1109 = vmatmul.bf16.gmra.mxu0 %v1029
        %v1110 = vpop.f32.mrf.mxu0
        %v1111 = vadd.f32 %v891, %v1110
        %v1112 = vpop.f32.mrf.mxu0
        %v1113 = vadd.f32 %v893, %v1112
        %1114 = vmatmul.bf16.gmra.mxu0 %v1032
        %v1115 = vpop.f32.mrf.mxu0
        %v1116 = vadd.f32 %v896, %v1115
        %v1117 = vpop.f32.mrf.mxu0
        %v1118 = vadd.f32 %v898, %v1117
        %1119 = vmatmul.bf16.gmra.mxu0 %v1035
        %v1120 = vpop.f32.mrf.mxu0
        %v1121 = vadd.f32 %v901, %v1120
        %v1122 = vpop.f32.mrf.mxu0
        %v1123 = vadd.f32 %v903, %v1122
        %1124 = vmatmul.bf16.gmra.mxu0 %v1038
        %v1125 = vpop.f32.mrf.mxu0
        %v1126 = vadd.f32 %v906, %v1125
        %v1127 = vpop.f32.mrf.mxu0
        %v1128 = vadd.f32 %v908, %v1127
        %1129 = vmatmul.bf16.gmra.mxu0 %v1041
        %v1130 = vpop.f32.mrf.mxu0
        %v1131 = vadd.f32 %v911, %v1130
        %v1132 = vpop.f32.mrf.mxu0
        %v1133 = vadd.f32 %v913, %v1132
        %1134 = vdwg.mxu0
        %vm1151 = vcmask 1042432
        %vm1152 = vcmask 1046532
        %vm1153 = vmor %vm1151, %vm1152
        %v1154 = vrot.slane %v281, 5
        %v1155 = vrot.slane %v1154, 4
        %v1156 = vrot.slane %v282, 5
        %v1157 = vsel %vm1153, %v1155, %v1156
        %v1158 = vrot.slane %v1156, 4
        %v1159 = vrot.slane %v283, 5
        %v1160 = vsel %vm1153, %v1158, %v1159
        %v1161 = vrot.slane %v284, 5
        %v1162 = vrot.slane %v1161, 4
        %v1163 = vrot.slane %v285, 5
        %v1164 = vsel %vm1153, %v1162, %v1163
        %v1165 = vrot.slane %v1163, 4
        %v1166 = vrot.slane %v286, 5
        %v1167 = vsel %vm1153, %v1165, %v1166
        %v1168 = vrot.slane %v287, 5
        %v1169 = vrot.slane %v1168, 4
        %v1170 = vrot.slane %v288, 5
        %v1171 = vsel %vm1153, %v1169, %v1170
        %v1172 = vrot.slane %v1170, 4
        %v1173 = vrot.slane %v289, 5
        %v1174 = vsel %vm1153, %v1172, %v1173
        %v1175 = vrot.slane %v290, 5
        %v1176 = vrot.slane %v1175, 4
        %v1177 = vrot.slane %v291, 5
        %v1178 = vsel %vm1153, %v1176, %v1177
        %v1179 = vrot.slane %v1177, 4
        %v1180 = vrot.slane %v292, 5
        %v1181 = vsel %vm1153, %v1179, %v1180
        %v1182 = vrot.slane %v293, 5
        %v1183 = vrot.slane %v1182, 4
        %v1184 = vrot.slane %v294, 5
        %v1185 = vsel %vm1153, %v1183, %v1184
        %v1186 = vrot.slane %v1184, 4
        %v1187 = vrot.slane %v295, 5
        %v1188 = vsel %vm1153, %v1186, %v1187
        %v1189 = vrot.slane %v296, 5
        %v1190 = vrot.slane %v1189, 4
        %v1191 = vrot.slane %v297, 5
        %v1192 = vsel %vm1153, %v1190, %v1191
        %v1193 = vrot.slane %v1191, 4
        %v1194 = vrot.slane %v298, 5
        %v1195 = vsel %vm1153, %v1193, %v1194
        %v1196 = vrot.slane %v299, 5
        %v1197 = vrot.slane %v1196, 4
        %v1198 = vrot.slane %v300, 5
        %v1199 = vsel %vm1153, %v1197, %v1198
        %v1200 = vrot.slane %v1198, 4
        %v1201 = vrot.slane %v301, 5
        %v1202 = vsel %vm1153, %v1200, %v1201
        %v1203 = vrot.slane %v302, 5
        %v1204 = vrot.slane %v1203, 4
        %v1205 = vrot.slane %v303, 5
        %v1206 = vsel %vm1153, %v1204, %v1205
        %v1207 = vrot.slane %v1205, 4
        %v1208 = vrot.slane %v304, 5
        %v1209 = vsel %vm1153, %v1207, %v1208
        %v1210 = vrot.slane %v305, 5
        %v1211 = vrot.slane %v1210, 4
        %v1212 = vrot.slane %v306, 5
        %v1213 = vsel %vm1153, %v1211, %v1212
        %v1214 = vrot.slane %v1212, 4
        %v1215 = vrot.slane %v307, 5
        %v1216 = vsel %vm1153, %v1214, %v1215
        %v1217 = vrot.slane %v308, 5
        %v1218 = vrot.slane %v1217, 4
        %v1219 = vrot.slane %v309, 5
        %v1220 = vsel %vm1153, %v1218, %v1219
        %v1221 = vrot.slane %v1219, 4
        %v1222 = vrot.slane %v310, 5
        %v1223 = vsel %vm1153, %v1221, %v1222
        %v1224 = vrot.slane %v311, 5
        %v1225 = vrot.slane %v1224, 4
        %v1226 = vrot.slane %v312, 5
        %v1227 = vsel %vm1153, %v1225, %v1226
        %v1228 = vrot.slane %v1226, 4
        %v1229 = vrot.slane %v313, 5
        %v1230 = vsel %vm1153, %v1228, %v1229
        %v1231 = vrot.slane %v314, 5
        %v1232 = vrot.slane %v1231, 4
        %v1233 = vrot.slane %v315, 5
        %v1234 = vsel %vm1153, %v1232, %v1233
        %v1235 = vrot.slane %v1233, 4
        %v1236 = vrot.slane %v316, 5
        %v1237 = vsel %vm1153, %v1235, %v1236
        %v1238 = vrot.slane %v317, 5
        %v1239 = vrot.slane %v1238, 4
        %v1240 = vrot.slane %v318, 5
        %v1241 = vsel %vm1153, %v1239, %v1240
        %v1242 = vrot.slane %v1240, 4
        %v1243 = vrot.slane %v319, 5
        %v1244 = vsel %vm1153, %v1242, %v1243
        %v1245 = vrot.slane %v320, 5
        %v1246 = vrot.slane %v1245, 4
        %v1247 = vrot.slane %v321, 5
        %v1248 = vsel %vm1153, %v1246, %v1247
        %v1249 = vrot.slane %v1247, 4
        %v1250 = vrot.slane %v322, 5
        %v1251 = vsel %vm1153, %v1249, %v1250
        %v1252 = vrot.slane %v323, 5
        %v1253 = vrot.slane %v1252, 4
        %v1254 = vrot.slane %v324, 5
        %v1255 = vsel %vm1153, %v1253, %v1254
        %v1256 = vrot.slane %v1254, 4
        %v1257 = vrot.slane %v325, 5
        %v1258 = vsel %vm1153, %v1256, %v1257
        %v1259 = vrot.slane %v326, 5
        %v1260 = vrot.slane %v1259, 4
        %v1261 = vrot.slane %v327, 5
        %v1262 = vsel %vm1153, %v1260, %v1261
        %v1263 = vrot.slane %v1261, 4
        %v1264 = vrot.slane %v328, 5
        %v1265 = vsel %vm1153, %v1263, %v1264
        %s1266 = scalar_lea.vmem %s1, 4
        %v1267 = vld [vmem:[%s1266] sm:$0x3]
        %v1268 = vunpack.c.l.b16 %v1157
        %v1269 = vunpack.c.l.b16 %v1160
        %v1270 = vunpack.c.l.b16 %v1164
        %v1271 = vunpack.c.l.b16 %v1167
        %v1272 = vunpack.c.l.b16 %v1171
        %v1273 = vunpack.c.l.b16 %v1174
        %v1274 = vunpack.c.l.b16 %v1178
        %v1275 = vunpack.c.l.b16 %v1181
        %v1276 = vunpack.c.l.b16 %v1185
        %v1277 = vunpack.c.l.b16 %v1188
        %v1278 = vunpack.c.l.b16 %v1192
        %v1279 = vunpack.c.l.b16 %v1195
        %v1280 = vunpack.c.l.b16 %v1199
        %v1281 = vunpack.c.l.b16 %v1202
        %v1282 = vunpack.c.l.b16 %v1206
        %v1283 = vunpack.c.l.b16 %v1209
        %v1284 = vunpack.c.l.b16 %v1213
        %v1285 = vunpack.c.l.b16 %v1216
        %v1286 = vunpack.c.l.b16 %v1220
        %v1287 = vunpack.c.l.b16 %v1223
        %v1288 = vunpack.c.l.b16 %v1227
        %v1289 = vunpack.c.l.b16 %v1230
        %v1290 = vunpack.c.l.b16 %v1234
        %v1291 = vunpack.c.l.b16 %v1237
        %v1292 = vunpack.c.l.b16 %v1241
        %v1293 = vunpack.c.l.b16 %v1244
        %v1294 = vunpack.c.l.b16 %v1248
        %v1295 = vunpack.c.l.b16 %v1251
        %v1296 = vunpack.c.l.b16 %v1255
        %v1297 = vunpack.c.l.b16 %v1258
        %v1298 = vunpack.c.l.b16 %v1262
        %v1299 = vunpack.c.l.b16 %v1265
        %v1300 = vpack.c.b16 %v1269, %v1268
        %v1301 = vpack.c.b16 %v1271, %v1270
        %v1302 = vpack.c.b16 %v1273, %v1272
        %v1303 = vpack.c.b16 %v1275, %v1274
        %v1304 = vpack.c.b16 %v1277, %v1276
        %v1305 = vpack.c.b16 %v1279, %v1278
        %v1306 = vpack.c.b16 %v1281, %v1280
        %v1307 = vpack.c.b16 %v1283, %v1282
        %v1308 = vpack.c.b16 %v1285, %v1284
        %v1309 = vpack.c.b16 %v1287, %v1286
        %v1310 = vpack.c.b16 %v1289, %v1288
        %v1311 = vpack.c.b16 %v1291, %v1290
        %v1312 = vpack.c.b16 %v1293, %v1292
        %v1313 = vpack.c.b16 %v1295, %v1294
        %v1314 = vpack.c.b16 %v1297, %v1296
        %v1315 = vpack.c.b16 %v1299, %v1298
        %v1317 = vsel %vm773, %v1300, 0
        %v1320 = vsel %vm773, %v1301, 0
        %v1323 = vsel %vm773, %v1302, 0
        %v1326 = vsel %vm773, %v1303, 0
        %v1329 = vsel %vm773, %v1304, 0
        %v1332 = vsel %vm773, %v1305, 0
        %v1335 = vsel %vm773, %v1306, 0
        %v1338 = vsel %vm773, %v1307, 0
        %v1341 = vsel %vm773, %v1308, 0
        %v1344 = vsel %vm773, %v1309, 0
        %v1347 = vsel %vm773, %v1310, 0
        %v1350 = vsel %vm773, %v1311, 0
        %v1353 = vsel %vm773, %v1312, 0
        %v1356 = vsel %vm773, %v1313, 0
        %v1359 = vsel %vm773, %v1314, 0
        %v1362 = vsel %vm773, %v1315, 0
        %v1365 = vsel %vm822, %v1267, 0
        %1367 = vmatpush.bf16.msra.mxu0 0
        %1368 = vmatpush.bf16.msra.mxu0 0
        %1369 = vmatpush.bf16.msra.mxu0 0
        %1370 = vmatpush.bf16.msra.mxu0 0
        %1371 = vmatpush.bf16.msra.mxu0 0
        %1372 = vmatpush.bf16.msra.mxu0 0
        %1373 = vmatpush.bf16.msra.mxu0 0
        %1374 = vmatpush.bf16.msra.mxu0 %v1365
        %1375 = vmatmul.bf16.gmra.mxu0 %v1317
        %v1376 = vpop.f32.mrf.mxu0
        %v1377 = vadd.f32 0.0, %v1376
        %v1378 = vpop.f32.mrf.mxu0
        %v1379 = vadd.f32 0.0, %v1378
        %1380 = vmatmul.bf16.gmra.mxu0 %v1320
        %v1381 = vpop.f32.mrf.mxu0
        %v1382 = vadd.f32 0.0, %v1381
        %v1383 = vpop.f32.mrf.mxu0
        %v1384 = vadd.f32 0.0, %v1383
        %1385 = vmatmul.bf16.gmra.mxu0 %v1323
        %v1386 = vpop.f32.mrf.mxu0
        %v1387 = vadd.f32 0.0, %v1386
        %v1388 = vpop.f32.mrf.mxu0
        %v1389 = vadd.f32 0.0, %v1388
        %1390 = vmatmul.bf16.gmra.mxu0 %v1326
        %v1391 = vpop.f32.mrf.mxu0
        %v1392 = vadd.f32 0.0, %v1391
        %v1393 = vpop.f32.mrf.mxu0
        %v1394 = vadd.f32 0.0, %v1393
        %1395 = vmatmul.bf16.gmra.mxu0 %v1329
        %v1396 = vpop.f32.mrf.mxu0
        %v1397 = vadd.f32 0.0, %v1396
        %v1398 = vpop.f32.mrf.mxu0
        %v1399 = vadd.f32 0.0, %v1398
        %1400 = vmatmul.bf16.gmra.mxu0 %v1332
        %v1401 = vpop.f32.mrf.mxu0
        %v1402 = vadd.f32 0.0, %v1401
        %v1403 = vpop.f32.mrf.mxu0
        %v1404 = vadd.f32 0.0, %v1403
        %1405 = vmatmul.bf16.gmra.mxu0 %v1335
        %v1406 = vpop.f32.mrf.mxu0
        %v1407 = vadd.f32 0.0, %v1406
        %v1408 = vpop.f32.mrf.mxu0
        %v1409 = vadd.f32 0.0, %v1408
        %1410 = vmatmul.bf16.gmra.mxu0 %v1338
        %v1411 = vpop.f32.mrf.mxu0
        %v1412 = vadd.f32 0.0, %v1411
        %v1413 = vpop.f32.mrf.mxu0
        %v1414 = vadd.f32 0.0, %v1413
        %1415 = vmatmul.bf16.gmra.mxu0 %v1341
        %v1416 = vpop.f32.mrf.mxu0
        %v1417 = vadd.f32 0.0, %v1416
        %v1418 = vpop.f32.mrf.mxu0
        %v1419 = vadd.f32 0.0, %v1418
        %1420 = vmatmul.bf16.gmra.mxu0 %v1344
        %v1421 = vpop.f32.mrf.mxu0
        %v1422 = vadd.f32 0.0, %v1421
        %v1423 = vpop.f32.mrf.mxu0
        %v1424 = vadd.f32 0.0, %v1423
        %1425 = vmatmul.bf16.gmra.mxu0 %v1347
        %v1426 = vpop.f32.mrf.mxu0
        %v1427 = vadd.f32 0.0, %v1426
        %v1428 = vpop.f32.mrf.mxu0
        %v1429 = vadd.f32 0.0, %v1428
        %1430 = vmatmul.bf16.gmra.mxu0 %v1350
        %v1431 = vpop.f32.mrf.mxu0
        %v1432 = vadd.f32 0.0, %v1431
        %v1433 = vpop.f32.mrf.mxu0
        %v1434 = vadd.f32 0.0, %v1433
        %1435 = vmatmul.bf16.gmra.mxu0 %v1353
        %v1436 = vpop.f32.mrf.mxu0
        %v1437 = vadd.f32 0.0, %v1436
        %v1438 = vpop.f32.mrf.mxu0
        %v1439 = vadd.f32 0.0, %v1438
        %1440 = vmatmul.bf16.gmra.mxu0 %v1356
        %v1441 = vpop.f32.mrf.mxu0
        %v1442 = vadd.f32 0.0, %v1441
        %v1443 = vpop.f32.mrf.mxu0
        %v1444 = vadd.f32 0.0, %v1443
        %1445 = vmatmul.bf16.gmra.mxu0 %v1359
        %v1446 = vpop.f32.mrf.mxu0
        %v1447 = vadd.f32 0.0, %v1446
        %v1448 = vpop.f32.mrf.mxu0
        %v1449 = vadd.f32 0.0, %v1448
        %1450 = vmatmul.bf16.gmra.mxu0 %v1362
        %v1451 = vpop.f32.mrf.mxu0
        %v1452 = vadd.f32 0.0, %v1451
        %v1453 = vpop.f32.mrf.mxu0
        %v1454 = vadd.f32 0.0, %v1453
        %1455 = vdwg.mxu0
        %v1456 = vadd.f32 %v1056, %v1377
        %v1457 = vadd.f32 %v1058, %v1379
        %v1458 = vadd.f32 %v1061, %v1382
        %v1459 = vadd.f32 %v1063, %v1384
        %v1460 = vadd.f32 %v1066, %v1387
        %v1461 = vadd.f32 %v1068, %v1389
        %v1462 = vadd.f32 %v1071, %v1392
        %v1463 = vadd.f32 %v1073, %v1394
        %v1464 = vadd.f32 %v1076, %v1397
        %v1465 = vadd.f32 %v1078, %v1399
        %v1466 = vadd.f32 %v1081, %v1402
        %v1467 = vadd.f32 %v1083, %v1404
        %v1468 = vadd.f32 %v1086, %v1407
        %v1469 = vadd.f32 %v1088, %v1409
        %v1470 = vadd.f32 %v1091, %v1412
        %v1471 = vadd.f32 %v1093, %v1414
        %v1472 = vadd.f32 %v1096, %v1417
        %v1473 = vadd.f32 %v1098, %v1419
        %v1474 = vadd.f32 %v1101, %v1422
        %v1475 = vadd.f32 %v1103, %v1424
        %v1476 = vadd.f32 %v1106, %v1427
        %v1477 = vadd.f32 %v1108, %v1429
        %v1478 = vadd.f32 %v1111, %v1432
        %v1479 = vadd.f32 %v1113, %v1434
        %v1480 = vadd.f32 %v1116, %v1437
        %v1481 = vadd.f32 %v1118, %v1439
        %v1482 = vadd.f32 %v1121, %v1442
        %v1483 = vadd.f32 %v1123, %v1444
        %v1484 = vadd.f32 %v1126, %v1447
        %v1485 = vadd.f32 %v1128, %v1449
        %v1486 = vadd.f32 %v1131, %v1452
        %v1487 = vadd.f32 %v1133, %v1454
        %s1488 = scalar_lea.vmem %s1, 6
        %v1489 = vld [vmem:[%s1488] sm:$0x3]
        %v1492 = vunpack.c.l.b16 %v329
        %v1493 = vunpack.c.l.b16 %v330
        %v1494 = vpack.c.b16 %v1493, %v1492
        %v1496 = vsel %vm773, %v1494, 0
        %v1499 = vsel %vm822, %v1489, 0
        %1501 = vmatpush.bf16.msra.mxu0 0
        %1502 = vmatpush.bf16.msra.mxu0 0
        %1503 = vmatpush.bf16.msra.mxu0 0
        %1504 = vmatpush.bf16.msra.mxu0 0
        %1505 = vmatpush.bf16.msra.mxu0 0
        %1506 = vmatpush.bf16.msra.mxu0 0
        %1507 = vmatpush.bf16.msra.mxu0 0
        %1508 = vmatpush.bf16.msra.mxu0 %v1499
        %1509 = vmatmul.bf16.gmra.mxu0 %v999
        %v1510 = vpop.f32.mrf.mxu0
        %v1511 = vadd.f32 0.0, %v1510
        %v1512 = vpop.f32.mrf.mxu0
        %v1513 = vadd.f32 0.0, %v1512
        %1514 = vmatmul.bf16.gmra.mxu0 %v1002
        %v1515 = vpop.f32.mrf.mxu0
        %v1516 = vadd.f32 0.0, %v1515
        %v1517 = vpop.f32.mrf.mxu0
        %v1518 = vadd.f32 0.0, %v1517
        %1519 = vmatmul.bf16.gmra.mxu0 %v1005
        %v1520 = vpop.f32.mrf.mxu0
        %v1521 = vadd.f32 0.0, %v1520
        %v1522 = vpop.f32.mrf.mxu0
        %v1523 = vadd.f32 0.0, %v1522
        %1524 = vmatmul.bf16.gmra.mxu0 %v1008
        %v1525 = vpop.f32.mrf.mxu0
        %v1526 = vadd.f32 0.0, %v1525
        %v1527 = vpop.f32.mrf.mxu0
        %v1528 = vadd.f32 0.0, %v1527
        %1529 = vmatmul.bf16.gmra.mxu0 %v1011
        %v1530 = vpop.f32.mrf.mxu0
        %v1531 = vadd.f32 0.0, %v1530
        %v1532 = vpop.f32.mrf.mxu0
        %v1533 = vadd.f32 0.0, %v1532
        %1534 = vmatmul.bf16.gmra.mxu0 %v1014
        %v1535 = vpop.f32.mrf.mxu0
        %v1536 = vadd.f32 0.0, %v1535
        %v1537 = vpop.f32.mrf.mxu0
        %v1538 = vadd.f32 0.0, %v1537
        %1539 = vmatmul.bf16.gmra.mxu0 %v1017
        %v1540 = vpop.f32.mrf.mxu0
        %v1541 = vadd.f32 0.0, %v1540
        %v1542 = vpop.f32.mrf.mxu0
        %v1543 = vadd.f32 0.0, %v1542
        %1544 = vmatmul.bf16.gmra.mxu0 %v1020
        %v1545 = vpop.f32.mrf.mxu0
        %v1546 = vadd.f32 0.0, %v1545
        %v1547 = vpop.f32.mrf.mxu0
        %v1548 = vadd.f32 0.0, %v1547
        %1549 = vmatmul.bf16.gmra.mxu0 %v1023
        %v1550 = vpop.f32.mrf.mxu0
        %v1551 = vadd.f32 0.0, %v1550
        %v1552 = vpop.f32.mrf.mxu0
        %v1553 = vadd.f32 0.0, %v1552
        %1554 = vmatmul.bf16.gmra.mxu0 %v1026
        %v1555 = vpop.f32.mrf.mxu0
        %v1556 = vadd.f32 0.0, %v1555
        %v1557 = vpop.f32.mrf.mxu0
        %v1558 = vadd.f32 0.0, %v1557
        %1559 = vmatmul.bf16.gmra.mxu0 %v1029
        %v1560 = vpop.f32.mrf.mxu0
        %v1561 = vadd.f32 0.0, %v1560
        %v1562 = vpop.f32.mrf.mxu0
        %v1563 = vadd.f32 0.0, %v1562
        %1564 = vmatmul.bf16.gmra.mxu0 %v1032
        %v1565 = vpop.f32.mrf.mxu0
        %v1566 = vadd.f32 0.0, %v1565
        %v1567 = vpop.f32.mrf.mxu0
        %v1568 = vadd.f32 0.0, %v1567
        %1569 = vmatmul.bf16.gmra.mxu0 %v1035
        %v1570 = vpop.f32.mrf.mxu0
        %v1571 = vadd.f32 0.0, %v1570
        %v1572 = vpop.f32.mrf.mxu0
        %v1573 = vadd.f32 0.0, %v1572
        %1574 = vmatmul.bf16.gmra.mxu0 %v1038
        %v1575 = vpop.f32.mrf.mxu0
        %v1576 = vadd.f32 0.0, %v1575
        %v1577 = vpop.f32.mrf.mxu0
        %v1578 = vadd.f32 0.0, %v1577
        %1579 = vmatmul.bf16.gmra.mxu0 %v1041
        %v1580 = vpop.f32.mrf.mxu0
        %v1581 = vadd.f32 0.0, %v1580
        %v1582 = vpop.f32.mrf.mxu0
        %v1583 = vadd.f32 0.0, %v1582
        %1584 = vmatmul.bf16.gmra.mxu0 %v1496
        %v1585 = vpop.f32.mrf.mxu0
        %v1586 = vadd.f32 0.0, %v1585
        %v1587 = vpop.f32.mrf.mxu0
        %v1588 = vadd.f32 0.0, %v1587
        %1589 = vdwg.mxu0
        %v1590 = vadd.f32 %v1456, %v1511
        %v1591 = vadd.f32 %v1457, %v1513
        %v1592 = vadd.f32 %v1458, %v1516
        %v1593 = vadd.f32 %v1459, %v1518
        %v1594 = vadd.f32 %v1460, %v1521
        %v1595 = vadd.f32 %v1461, %v1523
        %v1596 = vadd.f32 %v1462, %v1526
        %v1597 = vadd.f32 %v1463, %v1528
        %v1598 = vadd.f32 %v1464, %v1531
        %v1599 = vadd.f32 %v1465, %v1533
        %v1600 = vadd.f32 %v1466, %v1536
        %v1601 = vadd.f32 %v1467, %v1538
        %v1602 = vadd.f32 %v1468, %v1541
        %v1603 = vadd.f32 %v1469, %v1543
        %v1604 = vadd.f32 %v1470, %v1546
        %v1605 = vadd.f32 %v1471, %v1548
        %v1606 = vadd.f32 %v1472, %v1551
        %v1607 = vadd.f32 %v1473, %v1553
        %v1608 = vadd.f32 %v1474, %v1556
        %v1609 = vadd.f32 %v1475, %v1558
        %v1610 = vadd.f32 %v1476, %v1561
        %v1611 = vadd.f32 %v1477, %v1563
        %v1612 = vadd.f32 %v1478, %v1566
        %v1613 = vadd.f32 %v1479, %v1568
        %v1614 = vadd.f32 %v1480, %v1571
        %v1615 = vadd.f32 %v1481, %v1573
        %v1616 = vadd.f32 %v1482, %v1576
        %v1617 = vadd.f32 %v1483, %v1578
        %v1618 = vadd.f32 %v1484, %v1581
        %v1619 = vadd.f32 %v1485, %v1583
        %v1620 = vadd.f32 %v1486, %v1586
        %v1621 = vadd.f32 %v1487, %v1588
        %v1623 = vshrl.u32 %v329, 16
        %v1625 = vrot.slane %v1623, 4
        %v1626 = vshll.u32 %v329, 16
        %v1628 = vrot.slane %v1626, 5
        %v1629 = vor.u32 %v1625, %v1628
        %v1630 = vrot.slane %v1629, 4
        %v1632 = vshll.u32 %v330, 16
        %v1634 = vrot.slane %v1632, 5
        %v1635 = vsel %vm338, %v1630, %v1634
        %v1636 = vshrl.u32 %v330, 16
        %v1638 = vrot.slane %v1636, 4
        %v1639 = vor.u32 %v1638, %v1634
        %v1640 = vrot.slane %v1639, 4
        %v1642 = vshll.u32 %v331, 16
        %v1644 = vrot.slane %v1642, 5
        %v1645 = vsel %vm338, %v1640, %v1644
        %s1646 = scalar_lea.vmem %s1, 8
        %v1647 = vld [vmem:[%s1646] sm:$0x3]
        %v1648 = vunpack.c.l.b16 %v1635
        %v1649 = vunpack.c.l.b16 %v1645
        %v1650 = vpack.c.b16 %v1649, %v1648
        %v1652 = vsel %vm773, %v1650, 0
        %v1655 = vsel %vm822, %v1647, 0
        %1657 = vmatpush.bf16.msra.mxu0 0
        %1658 = vmatpush.bf16.msra.mxu0 0
        %1659 = vmatpush.bf16.msra.mxu0 0
        %1660 = vmatpush.bf16.msra.mxu0 0
        %1661 = vmatpush.bf16.msra.mxu0 0
        %1662 = vmatpush.bf16.msra.mxu0 0
        %1663 = vmatpush.bf16.msra.mxu0 0
        %1664 = vmatpush.bf16.msra.mxu0 %v1655
        %1665 = vmatmul.bf16.gmra.mxu0 %v778
        %v1666 = vpop.f32.mrf.mxu0
        %v1667 = vadd.f32 0.0, %v1666
        %v1668 = vpop.f32.mrf.mxu0
        %v1669 = vadd.f32 0.0, %v1668
        %1670 = vmatmul.bf16.gmra.mxu0 %v781
        %v1671 = vpop.f32.mrf.mxu0
        %v1672 = vadd.f32 0.0, %v1671
        %v1673 = vpop.f32.mrf.mxu0
        %v1674 = vadd.f32 0.0, %v1673
        %1675 = vmatmul.bf16.gmra.mxu0 %v784
        %v1676 = vpop.f32.mrf.mxu0
        %v1677 = vadd.f32 0.0, %v1676
        %v1678 = vpop.f32.mrf.mxu0
        %v1679 = vadd.f32 0.0, %v1678
        %1680 = vmatmul.bf16.gmra.mxu0 %v787
        %v1681 = vpop.f32.mrf.mxu0
        %v1682 = vadd.f32 0.0, %v1681
        %v1683 = vpop.f32.mrf.mxu0
        %v1684 = vadd.f32 0.0, %v1683
        %1685 = vmatmul.bf16.gmra.mxu0 %v790
        %v1686 = vpop.f32.mrf.mxu0
        %v1687 = vadd.f32 0.0, %v1686
        %v1688 = vpop.f32.mrf.mxu0
        %v1689 = vadd.f32 0.0, %v1688
        %1690 = vmatmul.bf16.gmra.mxu0 %v793
        %v1691 = vpop.f32.mrf.mxu0
        %v1692 = vadd.f32 0.0, %v1691
        %v1693 = vpop.f32.mrf.mxu0
        %v1694 = vadd.f32 0.0, %v1693
        %1695 = vmatmul.bf16.gmra.mxu0 %v796
        %v1696 = vpop.f32.mrf.mxu0
        %v1697 = vadd.f32 0.0, %v1696
        %v1698 = vpop.f32.mrf.mxu0
        %v1699 = vadd.f32 0.0, %v1698
        %1700 = vmatmul.bf16.gmra.mxu0 %v799
        %v1701 = vpop.f32.mrf.mxu0
        %v1702 = vadd.f32 0.0, %v1701
        %v1703 = vpop.f32.mrf.mxu0
        %v1704 = vadd.f32 0.0, %v1703
        %1705 = vmatmul.bf16.gmra.mxu0 %v802
        %v1706 = vpop.f32.mrf.mxu0
        %v1707 = vadd.f32 0.0, %v1706
        %v1708 = vpop.f32.mrf.mxu0
        %v1709 = vadd.f32 0.0, %v1708
        %1710 = vmatmul.bf16.gmra.mxu0 %v805
        %v1711 = vpop.f32.mrf.mxu0
        %v1712 = vadd.f32 0.0, %v1711
        %v1713 = vpop.f32.mrf.mxu0
        %v1714 = vadd.f32 0.0, %v1713
        %1715 = vmatmul.bf16.gmra.mxu0 %v808
        %v1716 = vpop.f32.mrf.mxu0
        %v1717 = vadd.f32 0.0, %v1716
        %v1718 = vpop.f32.mrf.mxu0
        %v1719 = vadd.f32 0.0, %v1718
        %1720 = vmatmul.bf16.gmra.mxu0 %v811
        %v1721 = vpop.f32.mrf.mxu0
        %v1722 = vadd.f32 0.0, %v1721
        %v1723 = vpop.f32.mrf.mxu0
        %v1724 = vadd.f32 0.0, %v1723
        %1725 = vmatmul.bf16.gmra.mxu0 %v814
        %v1726 = vpop.f32.mrf.mxu0
        %v1727 = vadd.f32 0.0, %v1726
        %v1728 = vpop.f32.mrf.mxu0
        %v1729 = vadd.f32 0.0, %v1728
        %1730 = vmatmul.bf16.gmra.mxu0 %v817
        %v1731 = vpop.f32.mrf.mxu0
        %v1732 = vadd.f32 0.0, %v1731
        %v1733 = vpop.f32.mrf.mxu0
        %v1734 = vadd.f32 0.0, %v1733
        %1735 = vmatmul.bf16.gmra.mxu0 %v820
        %v1736 = vpop.f32.mrf.mxu0
        %v1737 = vadd.f32 0.0, %v1736
        %v1738 = vpop.f32.mrf.mxu0
        %v1739 = vadd.f32 0.0, %v1738
        %1740 = vmatmul.bf16.gmra.mxu0 %v1652
        %v1741 = vpop.f32.mrf.mxu0
        %v1742 = vadd.f32 0.0, %v1741
        %v1743 = vpop.f32.mrf.mxu0
        %v1744 = vadd.f32 0.0, %v1743
        %1745 = vdwg.mxu0
        %v1746 = vadd.f32 %v1590, %v1667
        %v1747 = vadd.f32 %v1591, %v1669
        %v1748 = vadd.f32 %v1592, %v1672
        %v1749 = vadd.f32 %v1593, %v1674
        %v1750 = vadd.f32 %v1594, %v1677
        %v1751 = vadd.f32 %v1595, %v1679
        %v1752 = vadd.f32 %v1596, %v1682
        %v1753 = vadd.f32 %v1597, %v1684
        %v1754 = vadd.f32 %v1598, %v1687
        %v1755 = vadd.f32 %v1599, %v1689
        %v1756 = vadd.f32 %v1600, %v1692
        %v1757 = vadd.f32 %v1601, %v1694
        %v1758 = vadd.f32 %v1602, %v1697
        %v1759 = vadd.f32 %v1603, %v1699
        %v1760 = vadd.f32 %v1604, %v1702
        %v1761 = vadd.f32 %v1605, %v1704
        %v1762 = vadd.f32 %v1606, %v1707
        %v1763 = vadd.f32 %v1607, %v1709
        %v1764 = vadd.f32 %v1608, %v1712
        %v1765 = vadd.f32 %v1609, %v1714
        %v1766 = vadd.f32 %v1610, %v1717
        %v1767 = vadd.f32 %v1611, %v1719
        %v1768 = vadd.f32 %v1612, %v1722
        %v1769 = vadd.f32 %v1613, %v1724
        %v1770 = vadd.f32 %v1614, %v1727
        %v1771 = vadd.f32 %v1615, %v1729
        %v1772 = vadd.f32 %v1616, %v1732
        %v1773 = vadd.f32 %v1617, %v1734
        %v1774 = vadd.f32 %v1618, %v1737
        %v1775 = vadd.f32 %v1619, %v1739
        %v1776 = vadd.f32 %v1620, %v1742
        %v1777 = vadd.f32 %v1621, %v1744
        %v1779 = vrot.slane %v329, 5
        %v1780 = vrot.slane %v1779, 4
        %v1781 = vrot.slane %v330, 5
        %v1782 = vsel %vm1153, %v1780, %v1781
        %v1783 = vrot.slane %v1781, 4
        %v1784 = vrot.slane %v331, 5
        %v1785 = vsel %vm1153, %v1783, %v1784
        %s1786 = scalar_lea.vmem %s1, 10
        %v1787 = vld [vmem:[%s1786] sm:$0x3]
        %v1788 = vunpack.c.l.b16 %v1782
        %v1789 = vunpack.c.l.b16 %v1785
        %v1790 = vpack.c.b16 %v1789, %v1788
        %v1792 = vsel %vm773, %v1790, 0
        %v1795 = vsel %vm822, %v1787, 0
        %1797 = vmatpush.bf16.msra.mxu0 0
        %1798 = vmatpush.bf16.msra.mxu0 0
        %1799 = vmatpush.bf16.msra.mxu0 0
        %1800 = vmatpush.bf16.msra.mxu0 0
        %1801 = vmatpush.bf16.msra.mxu0 0
        %1802 = vmatpush.bf16.msra.mxu0 0
        %1803 = vmatpush.bf16.msra.mxu0 0
        %1804 = vmatpush.bf16.msra.mxu0 %v1795
        %1805 = vmatmul.bf16.gmra.mxu0 %v1320
        %v1806 = vpop.f32.mrf.mxu0
        %v1807 = vadd.f32 0.0, %v1806
        %v1808 = vpop.f32.mrf.mxu0
        %v1809 = vadd.f32 0.0, %v1808
        %1810 = vmatmul.bf16.gmra.mxu0 %v1323
        %v1811 = vpop.f32.mrf.mxu0
        %v1812 = vadd.f32 0.0, %v1811
        %v1813 = vpop.f32.mrf.mxu0
        %v1814 = vadd.f32 0.0, %v1813
        %1815 = vmatmul.bf16.gmra.mxu0 %v1326
        %v1816 = vpop.f32.mrf.mxu0
        %v1817 = vadd.f32 0.0, %v1816
        %v1818 = vpop.f32.mrf.mxu0
        %v1819 = vadd.f32 0.0, %v1818
        %1820 = vmatmul.bf16.gmra.mxu0 %v1329
        %v1821 = vpop.f32.mrf.mxu0
        %v1822 = vadd.f32 0.0, %v1821
        %v1823 = vpop.f32.mrf.mxu0
        %v1824 = vadd.f32 0.0, %v1823
        %1825 = vmatmul.bf16.gmra.mxu0 %v1332
        %v1826 = vpop.f32.mrf.mxu0
        %v1827 = vadd.f32 0.0, %v1826
        %v1828 = vpop.f32.mrf.mxu0
        %v1829 = vadd.f32 0.0, %v1828
        %1830 = vmatmul.bf16.gmra.mxu0 %v1335
        %v1831 = vpop.f32.mrf.mxu0
        %v1832 = vadd.f32 0.0, %v1831
        %v1833 = vpop.f32.mrf.mxu0
        %v1834 = vadd.f32 0.0, %v1833
        %1835 = vmatmul.bf16.gmra.mxu0 %v1338
        %v1836 = vpop.f32.mrf.mxu0
        %v1837 = vadd.f32 0.0, %v1836
        %v1838 = vpop.f32.mrf.mxu0
        %v1839 = vadd.f32 0.0, %v1838
        %1840 = vmatmul.bf16.gmra.mxu0 %v1341
        %v1841 = vpop.f32.mrf.mxu0
        %v1842 = vadd.f32 0.0, %v1841
        %v1843 = vpop.f32.mrf.mxu0
        %v1844 = vadd.f32 0.0, %v1843
        %1845 = vmatmul.bf16.gmra.mxu0 %v1344
        %v1846 = vpop.f32.mrf.mxu0
        %v1847 = vadd.f32 0.0, %v1846
        %v1848 = vpop.f32.mrf.mxu0
        %v1849 = vadd.f32 0.0, %v1848
        %1850 = vmatmul.bf16.gmra.mxu0 %v1347
        %v1851 = vpop.f32.mrf.mxu0
        %v1852 = vadd.f32 0.0, %v1851
        %v1853 = vpop.f32.mrf.mxu0
        %v1854 = vadd.f32 0.0, %v1853
        %1855 = vmatmul.bf16.gmra.mxu0 %v1350
        %v1856 = vpop.f32.mrf.mxu0
        %v1857 = vadd.f32 0.0, %v1856
        %v1858 = vpop.f32.mrf.mxu0
        %v1859 = vadd.f32 0.0, %v1858
        %1860 = vmatmul.bf16.gmra.mxu0 %v1353
        %v1861 = vpop.f32.mrf.mxu0
        %v1862 = vadd.f32 0.0, %v1861
        %v1863 = vpop.f32.mrf.mxu0
        %v1864 = vadd.f32 0.0, %v1863
        %1865 = vmatmul.bf16.gmra.mxu0 %v1356
        %v1866 = vpop.f32.mrf.mxu0
        %v1867 = vadd.f32 0.0, %v1866
        %v1868 = vpop.f32.mrf.mxu0
        %v1869 = vadd.f32 0.0, %v1868
        %1870 = vmatmul.bf16.gmra.mxu0 %v1359
        %v1871 = vpop.f32.mrf.mxu0
        %v1872 = vadd.f32 0.0, %v1871
        %v1873 = vpop.f32.mrf.mxu0
        %v1874 = vadd.f32 0.0, %v1873
        %1875 = vmatmul.bf16.gmra.mxu0 %v1362
        %v1876 = vpop.f32.mrf.mxu0
        %v1877 = vadd.f32 0.0, %v1876
        %v1878 = vpop.f32.mrf.mxu0
        %v1879 = vadd.f32 0.0, %v1878
        %1880 = vmatmul.bf16.gmra.mxu0 %v1792
        %v1881 = vpop.f32.mrf.mxu0
        %v1882 = vadd.f32 0.0, %v1881
        %v1883 = vpop.f32.mrf.mxu0
        %v1884 = vadd.f32 0.0, %v1883
        %1885 = vdwg.mxu0
        %v1886 = vadd.f32 %v1746, %v1807
        %v1887 = vadd.f32 %v1747, %v1809
        %v1888 = vadd.f32 %v1748, %v1812
        %v1889 = vadd.f32 %v1749, %v1814
        %v1890 = vadd.f32 %v1750, %v1817
        %v1891 = vadd.f32 %v1751, %v1819
        %v1892 = vadd.f32 %v1752, %v1822
        %v1893 = vadd.f32 %v1753, %v1824
        %v1894 = vadd.f32 %v1754, %v1827
        %v1895 = vadd.f32 %v1755, %v1829
        %v1896 = vadd.f32 %v1756, %v1832
        %v1897 = vadd.f32 %v1757, %v1834
        %v1898 = vadd.f32 %v1758, %v1837
        %v1899 = vadd.f32 %v1759, %v1839
        %v1900 = vadd.f32 %v1760, %v1842
        %v1901 = vadd.f32 %v1761, %v1844
        %v1902 = vadd.f32 %v1762, %v1847
        %v1903 = vadd.f32 %v1763, %v1849
        %v1904 = vadd.f32 %v1764, %v1852
        %v1905 = vadd.f32 %v1765, %v1854
        %v1906 = vadd.f32 %v1766, %v1857
        %v1907 = vadd.f32 %v1767, %v1859
        %v1908 = vadd.f32 %v1768, %v1862
        %v1909 = vadd.f32 %v1769, %v1864
        %v1910 = vadd.f32 %v1770, %v1867
        %v1911 = vadd.f32 %v1771, %v1869
        %v1912 = vadd.f32 %v1772, %v1872
        %v1913 = vadd.f32 %v1773, %v1874
        %v1914 = vadd.f32 %v1774, %v1877
        %v1915 = vadd.f32 %v1775, %v1879
        %v1916 = vadd.f32 %v1776, %v1882
        %v1917 = vadd.f32 %v1777, %v1884
        %s1918 = scalar_lea.vmem %s1, 12
        %v1919 = vld [vmem:[%s1918] sm:$0x3]
        %v1922 = vunpack.c.l.b16 %v332
        %v1923 = vunpack.c.l.b16 %v333
        %v1924 = vpack.c.b16 %v1923, %v1922
        %v1926 = vsel %vm773, %v1924, 0
        %v1929 = vsel %vm822, %v1919, 0
        %1931 = vmatpush.bf16.msra.mxu0 0
        %1932 = vmatpush.bf16.msra.mxu0 0
        %1933 = vmatpush.bf16.msra.mxu0 0
        %1934 = vmatpush.bf16.msra.mxu0 0
        %1935 = vmatpush.bf16.msra.mxu0 0
        %1936 = vmatpush.bf16.msra.mxu0 0
        %1937 = vmatpush.bf16.msra.mxu0 0
        %1938 = vmatpush.bf16.msra.mxu0 %v1929
        %1939 = vmatmul.bf16.gmra.mxu0 %v1002
        %v1940 = vpop.f32.mrf.mxu0
        %v1941 = vadd.f32 0.0, %v1940
        %v1942 = vpop.f32.mrf.mxu0
        %v1943 = vadd.f32 0.0, %v1942
        %1944 = vmatmul.bf16.gmra.mxu0 %v1005
        %v1945 = vpop.f32.mrf.mxu0
        %v1946 = vadd.f32 0.0, %v1945
        %v1947 = vpop.f32.mrf.mxu0
        %v1948 = vadd.f32 0.0, %v1947
        %1949 = vmatmul.bf16.gmra.mxu0 %v1008
        %v1950 = vpop.f32.mrf.mxu0
        %v1951 = vadd.f32 0.0, %v1950
        %v1952 = vpop.f32.mrf.mxu0
        %v1953 = vadd.f32 0.0, %v1952
        %1954 = vmatmul.bf16.gmra.mxu0 %v1011
        %v1955 = vpop.f32.mrf.mxu0
        %v1956 = vadd.f32 0.0, %v1955
        %v1957 = vpop.f32.mrf.mxu0
        %v1958 = vadd.f32 0.0, %v1957
        %1959 = vmatmul.bf16.gmra.mxu0 %v1014
        %v1960 = vpop.f32.mrf.mxu0
        %v1961 = vadd.f32 0.0, %v1960
        %v1962 = vpop.f32.mrf.mxu0
        %v1963 = vadd.f32 0.0, %v1962
        %1964 = vmatmul.bf16.gmra.mxu0 %v1017
        %v1965 = vpop.f32.mrf.mxu0
        %v1966 = vadd.f32 0.0, %v1965
        %v1967 = vpop.f32.mrf.mxu0
        %v1968 = vadd.f32 0.0, %v1967
        %1969 = vmatmul.bf16.gmra.mxu0 %v1020
        %v1970 = vpop.f32.mrf.mxu0
        %v1971 = vadd.f32 0.0, %v1970
        %v1972 = vpop.f32.mrf.mxu0
        %v1973 = vadd.f32 0.0, %v1972
        %1974 = vmatmul.bf16.gmra.mxu0 %v1023
        %v1975 = vpop.f32.mrf.mxu0
        %v1976 = vadd.f32 0.0, %v1975
        %v1977 = vpop.f32.mrf.mxu0
        %v1978 = vadd.f32 0.0, %v1977
        %1979 = vmatmul.bf16.gmra.mxu0 %v1026
        %v1980 = vpop.f32.mrf.mxu0
        %v1981 = vadd.f32 0.0, %v1980
        %v1982 = vpop.f32.mrf.mxu0
        %v1983 = vadd.f32 0.0, %v1982
        %1984 = vmatmul.bf16.gmra.mxu0 %v1029
        %v1985 = vpop.f32.mrf.mxu0
        %v1986 = vadd.f32 0.0, %v1985
        %v1987 = vpop.f32.mrf.mxu0
        %v1988 = vadd.f32 0.0, %v1987
        %1989 = vmatmul.bf16.gmra.mxu0 %v1032
        %v1990 = vpop.f32.mrf.mxu0
        %v1991 = vadd.f32 0.0, %v1990
        %v1992 = vpop.f32.mrf.mxu0
        %v1993 = vadd.f32 0.0, %v1992
        %1994 = vmatmul.bf16.gmra.mxu0 %v1035
        %v1995 = vpop.f32.mrf.mxu0
        %v1996 = vadd.f32 0.0, %v1995
        %v1997 = vpop.f32.mrf.mxu0
        %v1998 = vadd.f32 0.0, %v1997
        %1999 = vmatmul.bf16.gmra.mxu0 %v1038
        %v2000 = vpop.f32.mrf.mxu0
        %v2001 = vadd.f32 0.0, %v2000
        %v2002 = vpop.f32.mrf.mxu0
        %v2003 = vadd.f32 0.0, %v2002
        %2004 = vmatmul.bf16.gmra.mxu0 %v1041
        %v2005 = vpop.f32.mrf.mxu0
        %v2006 = vadd.f32 0.0, %v2005
        %v2007 = vpop.f32.mrf.mxu0
        %v2008 = vadd.f32 0.0, %v2007
        %2009 = vmatmul.bf16.gmra.mxu0 %v1496
        %v2010 = vpop.f32.mrf.mxu0
        %v2011 = vadd.f32 0.0, %v2010
        %v2012 = vpop.f32.mrf.mxu0
        %v2013 = vadd.f32 0.0, %v2012
        %2014 = vmatmul.bf16.gmra.mxu0 %v1926
        %v2015 = vpop.f32.mrf.mxu0
        %v2016 = vadd.f32 0.0, %v2015
        %v2017 = vpop.f32.mrf.mxu0
        %v2018 = vadd.f32 0.0, %v2017
        %2019 = vdwg.mxu0
        %v2020 = vadd.f32 %v1886, %v1941
        %v2021 = vadd.f32 %v1887, %v1943
        %v2022 = vadd.f32 %v1888, %v1946
        %v2023 = vadd.f32 %v1889, %v1948
        %v2024 = vadd.f32 %v1890, %v1951
        %v2025 = vadd.f32 %v1891, %v1953
        %v2026 = vadd.f32 %v1892, %v1956
        %v2027 = vadd.f32 %v1893, %v1958
        %v2028 = vadd.f32 %v1894, %v1961
        %v2029 = vadd.f32 %v1895, %v1963
        %v2030 = vadd.f32 %v1896, %v1966
        %v2031 = vadd.f32 %v1897, %v1968
        %v2032 = vadd.f32 %v1898, %v1971
        %v2033 = vadd.f32 %v1899, %v1973
        %v2034 = vadd.f32 %v1900, %v1976
        %v2035 = vadd.f32 %v1901, %v1978
        %v2036 = vadd.f32 %v1902, %v1981
        %v2037 = vadd.f32 %v1903, %v1983
        %v2038 = vadd.f32 %v1904, %v1986
        %v2039 = vadd.f32 %v1905, %v1988
        %v2040 = vadd.f32 %v1906, %v1991
        %v2041 = vadd.f32 %v1907, %v1993
        %v2042 = vadd.f32 %v1908, %v1996
        %v2043 = vadd.f32 %v1909, %v1998
        %v2044 = vadd.f32 %v1910, %v2001
        %v2045 = vadd.f32 %v1911, %v2003
        %v2046 = vadd.f32 %v1912, %v2006
        %v2047 = vadd.f32 %v1913, %v2008
        %v2048 = vadd.f32 %v1914, %v2011
        %v2049 = vadd.f32 %v1915, %v2013
        %v2050 = vadd.f32 %v1916, %v2016
        %v2051 = vadd.f32 %v1917, %v2018
        %v2053 = vshrl.u32 %v332, 16
        %v2055 = vrot.slane %v2053, 4
        %v2056 = vshll.u32 %v332, 16
        %v2058 = vrot.slane %v2056, 5
        %v2059 = vor.u32 %v2055, %v2058
        %v2060 = vrot.slane %v2059, 4
        %v2062 = vshll.u32 %v333, 16
        %v2064 = vrot.slane %v2062, 5
        %v2065 = vsel %vm338, %v2060, %v2064
        %v2066 = vshrl.u32 %v333, 16
        %v2068 = vrot.slane %v2066, 4
        %v2069 = vor.u32 %v2068, %v2064
        %v2070 = vrot.slane %v2069, 4
        %v2072 = vshll.u32 %v334, 16
        %v2074 = vrot.slane %v2072, 5
        %v2075 = vsel %vm338, %v2070, %v2074
        %s2076 = scalar_lea.vmem %s1, 14
        %v2077 = vld [vmem:[%s2076] sm:$0x3]
        %v2078 = vunpack.c.l.b16 %v2065
        %v2079 = vunpack.c.l.b16 %v2075
        %v2080 = vpack.c.b16 %v2079, %v2078
        %v2082 = vsel %vm773, %v2080, 0
        %v2085 = vsel %vm822, %v2077, 0
        %2087 = vmatpush.bf16.msra.mxu0 0
        %2088 = vmatpush.bf16.msra.mxu0 0
        %2089 = vmatpush.bf16.msra.mxu0 0
        %2090 = vmatpush.bf16.msra.mxu0 0
        %2091 = vmatpush.bf16.msra.mxu0 0
        %2092 = vmatpush.bf16.msra.mxu0 0
        %2093 = vmatpush.bf16.msra.mxu0 0
        %2094 = vmatpush.bf16.msra.mxu0 %v2085
        %2095 = vmatmul.bf16.gmra.mxu0 %v781
        %v2096 = vpop.f32.mrf.mxu0
        %v2097 = vadd.f32 0.0, %v2096
        %v2098 = vpop.f32.mrf.mxu0
        %v2099 = vadd.f32 0.0, %v2098
        %2100 = vmatmul.bf16.gmra.mxu0 %v784
        %v2101 = vpop.f32.mrf.mxu0
        %v2102 = vadd.f32 0.0, %v2101
        %v2103 = vpop.f32.mrf.mxu0
        %v2104 = vadd.f32 0.0, %v2103
        %2105 = vmatmul.bf16.gmra.mxu0 %v787
        %v2106 = vpop.f32.mrf.mxu0
        %v2107 = vadd.f32 0.0, %v2106
        %v2108 = vpop.f32.mrf.mxu0
        %v2109 = vadd.f32 0.0, %v2108
        %2110 = vmatmul.bf16.gmra.mxu0 %v790
        %v2111 = vpop.f32.mrf.mxu0
        %v2112 = vadd.f32 0.0, %v2111
        %v2113 = vpop.f32.mrf.mxu0
        %v2114 = vadd.f32 0.0, %v2113
        %2115 = vmatmul.bf16.gmra.mxu0 %v793
        %v2116 = vpop.f32.mrf.mxu0
        %v2117 = vadd.f32 0.0, %v2116
        %v2118 = vpop.f32.mrf.mxu0
        %v2119 = vadd.f32 0.0, %v2118
        %2120 = vmatmul.bf16.gmra.mxu0 %v796
        %v2121 = vpop.f32.mrf.mxu0
        %v2122 = vadd.f32 0.0, %v2121
        %v2123 = vpop.f32.mrf.mxu0
        %v2124 = vadd.f32 0.0, %v2123
        %2125 = vmatmul.bf16.gmra.mxu0 %v799
        %v2126 = vpop.f32.mrf.mxu0
        %v2127 = vadd.f32 0.0, %v2126
        %v2128 = vpop.f32.mrf.mxu0
        %v2129 = vadd.f32 0.0, %v2128
        %2130 = vmatmul.bf16.gmra.mxu0 %v802
        %v2131 = vpop.f32.mrf.mxu0
        %v2132 = vadd.f32 0.0, %v2131
        %v2133 = vpop.f32.mrf.mxu0
        %v2134 = vadd.f32 0.0, %v2133
        %2135 = vmatmul.bf16.gmra.mxu0 %v805
        %v2136 = vpop.f32.mrf.mxu0
        %v2137 = vadd.f32 0.0, %v2136
        %v2138 = vpop.f32.mrf.mxu0
        %v2139 = vadd.f32 0.0, %v2138
        %2140 = vmatmul.bf16.gmra.mxu0 %v808
        %v2141 = vpop.f32.mrf.mxu0
        %v2142 = vadd.f32 0.0, %v2141
        %v2143 = vpop.f32.mrf.mxu0
        %v2144 = vadd.f32 0.0, %v2143
        %2145 = vmatmul.bf16.gmra.mxu0 %v811
        %v2146 = vpop.f32.mrf.mxu0
        %v2147 = vadd.f32 0.0, %v2146
        %v2148 = vpop.f32.mrf.mxu0
        %v2149 = vadd.f32 0.0, %v2148
        %2150 = vmatmul.bf16.gmra.mxu0 %v814
        %v2151 = vpop.f32.mrf.mxu0
        %v2152 = vadd.f32 0.0, %v2151
        %v2153 = vpop.f32.mrf.mxu0
        %v2154 = vadd.f32 0.0, %v2153
        %2155 = vmatmul.bf16.gmra.mxu0 %v817
        %v2156 = vpop.f32.mrf.mxu0
        %v2157 = vadd.f32 0.0, %v2156
        %v2158 = vpop.f32.mrf.mxu0
        %v2159 = vadd.f32 0.0, %v2158
        %2160 = vmatmul.bf16.gmra.mxu0 %v820
        %v2161 = vpop.f32.mrf.mxu0
        %v2162 = vadd.f32 0.0, %v2161
        %v2163 = vpop.f32.mrf.mxu0
        %v2164 = vadd.f32 0.0, %v2163
        %2165 = vmatmul.bf16.gmra.mxu0 %v1652
        %v2166 = vpop.f32.mrf.mxu0
        %v2167 = vadd.f32 0.0, %v2166
        %v2168 = vpop.f32.mrf.mxu0
        %v2169 = vadd.f32 0.0, %v2168
        %2170 = vmatmul.bf16.gmra.mxu0 %v2082
        %v2171 = vpop.f32.mrf.mxu0
        %v2172 = vadd.f32 0.0, %v2171
        %v2173 = vpop.f32.mrf.mxu0
        %v2174 = vadd.f32 0.0, %v2173
        %2175 = vdwg.mxu0
        %v2176 = vadd.f32 %v2020, %v2097
        %v2177 = vadd.f32 %v2021, %v2099
        %v2178 = vadd.f32 %v2022, %v2102
        %v2179 = vadd.f32 %v2023, %v2104
        %v2180 = vadd.f32 %v2024, %v2107
        %v2181 = vadd.f32 %v2025, %v2109
        %v2182 = vadd.f32 %v2026, %v2112
        %v2183 = vadd.f32 %v2027, %v2114
        %v2184 = vadd.f32 %v2028, %v2117
        %v2185 = vadd.f32 %v2029, %v2119
        %v2186 = vadd.f32 %v2030, %v2122
        %v2187 = vadd.f32 %v2031, %v2124
        %v2188 = vadd.f32 %v2032, %v2127
        %v2189 = vadd.f32 %v2033, %v2129
        %v2190 = vadd.f32 %v2034, %v2132
        %v2191 = vadd.f32 %v2035, %v2134
        %v2192 = vadd.f32 %v2036, %v2137
        %v2193 = vadd.f32 %v2037, %v2139
        %v2194 = vadd.f32 %v2038, %v2142
        %v2195 = vadd.f32 %v2039, %v2144
        %v2196 = vadd.f32 %v2040, %v2147
        %v2197 = vadd.f32 %v2041, %v2149
        %v2198 = vadd.f32 %v2042, %v2152
        %v2199 = vadd.f32 %v2043, %v2154
        %v2200 = vadd.f32 %v2044, %v2157
        %v2201 = vadd.f32 %v2045, %v2159
        %v2202 = vadd.f32 %v2046, %v2162
        %v2203 = vadd.f32 %v2047, %v2164
        %v2204 = vadd.f32 %v2048, %v2167
        %v2205 = vadd.f32 %v2049, %v2169
        %v2206 = vadd.f32 %v2050, %v2172
        %v2207 = vadd.f32 %v2051, %v2174
        %v2209 = vrot.slane %v332, 5
        %v2210 = vrot.slane %v2209, 4
        %v2211 = vrot.slane %v333, 5
        %v2212 = vsel %vm1153, %v2210, %v2211
        %v2213 = vrot.slane %v2211, 4
        %v2214 = vrot.slane %v334, 5
        %v2215 = vsel %vm1153, %v2213, %v2214
        %s2216 = scalar_lea.vmem %s1, 16
        %v2217 = vld [vmem:[%s2216] sm:$0x3]
        %v2218 = vunpack.c.l.b16 %v2212
        %v2219 = vunpack.c.l.b16 %v2215
        %v2220 = vpack.c.b16 %v2219, %v2218
        %v2222 = vsel %vm773, %v2220, 0
        %v2225 = vsel %vm822, %v2217, 0
        %2227 = vmatpush.bf16.msra.mxu0 0
        %2228 = vmatpush.bf16.msra.mxu0 0
        %2229 = vmatpush.bf16.msra.mxu0 0
        %2230 = vmatpush.bf16.msra.mxu0 0
        %2231 = vmatpush.bf16.msra.mxu0 0
        %2232 = vmatpush.bf16.msra.mxu0 0
        %2233 = vmatpush.bf16.msra.mxu0 0
        %2234 = vmatpush.bf16.msra.mxu0 %v2225
        %2235 = vmatmul.bf16.gmra.mxu0 %v1323
        %v2236 = vpop.f32.mrf.mxu0
        %v2237 = vadd.f32 0.0, %v2236
        %v2238 = vpop.f32.mrf.mxu0
        %v2239 = vadd.f32 0.0, %v2238
        %2240 = vmatmul.bf16.gmra.mxu0 %v1326
        %v2241 = vpop.f32.mrf.mxu0
        %v2242 = vadd.f32 0.0, %v2241
        %v2243 = vpop.f32.mrf.mxu0
        %v2244 = vadd.f32 0.0, %v2243
        %2245 = vmatmul.bf16.gmra.mxu0 %v1329
        %v2246 = vpop.f32.mrf.mxu0
        %v2247 = vadd.f32 0.0, %v2246
        %v2248 = vpop.f32.mrf.mxu0
        %v2249 = vadd.f32 0.0, %v2248
        %2250 = vmatmul.bf16.gmra.mxu0 %v1332
        %v2251 = vpop.f32.mrf.mxu0
        %v2252 = vadd.f32 0.0, %v2251
        %v2253 = vpop.f32.mrf.mxu0
        %v2254 = vadd.f32 0.0, %v2253
        %2255 = vmatmul.bf16.gmra.mxu0 %v1335
        %v2256 = vpop.f32.mrf.mxu0
        %v2257 = vadd.f32 0.0, %v2256
        %v2258 = vpop.f32.mrf.mxu0
        %v2259 = vadd.f32 0.0, %v2258
        %2260 = vmatmul.bf16.gmra.mxu0 %v1338
        %v2261 = vpop.f32.mrf.mxu0
        %v2262 = vadd.f32 0.0, %v2261
        %v2263 = vpop.f32.mrf.mxu0
        %v2264 = vadd.f32 0.0, %v2263
        %2265 = vmatmul.bf16.gmra.mxu0 %v1341
        %v2266 = vpop.f32.mrf.mxu0
        %v2267 = vadd.f32 0.0, %v2266
        %v2268 = vpop.f32.mrf.mxu0
        %v2269 = vadd.f32 0.0, %v2268
        %2270 = vmatmul.bf16.gmra.mxu0 %v1344
        %v2271 = vpop.f32.mrf.mxu0
        %v2272 = vadd.f32 0.0, %v2271
        %v2273 = vpop.f32.mrf.mxu0
        %v2274 = vadd.f32 0.0, %v2273
        %2275 = vmatmul.bf16.gmra.mxu0 %v1347
        %v2276 = vpop.f32.mrf.mxu0
        %v2277 = vadd.f32 0.0, %v2276
        %v2278 = vpop.f32.mrf.mxu0
        %v2279 = vadd.f32 0.0, %v2278
        %2280 = vmatmul.bf16.gmra.mxu0 %v1350
        %v2281 = vpop.f32.mrf.mxu0
        %v2282 = vadd.f32 0.0, %v2281
        %v2283 = vpop.f32.mrf.mxu0
        %v2284 = vadd.f32 0.0, %v2283
        %2285 = vmatmul.bf16.gmra.mxu0 %v1353
        %v2286 = vpop.f32.mrf.mxu0
        %v2287 = vadd.f32 0.0, %v2286
        %v2288 = vpop.f32.mrf.mxu0
        %v2289 = vadd.f32 0.0, %v2288
        %2290 = vmatmul.bf16.gmra.mxu0 %v1356
        %v2291 = vpop.f32.mrf.mxu0
        %v2292 = vadd.f32 0.0, %v2291
        %v2293 = vpop.f32.mrf.mxu0
        %v2294 = vadd.f32 0.0, %v2293
        %2295 = vmatmul.bf16.gmra.mxu0 %v1359
        %v2296 = vpop.f32.mrf.mxu0
        %v2297 = vadd.f32 0.0, %v2296
        %v2298 = vpop.f32.mrf.mxu0
        %v2299 = vadd.f32 0.0, %v2298
        %2300 = vmatmul.bf16.gmra.mxu0 %v1362
        %v2301 = vpop.f32.mrf.mxu0
        %v2302 = vadd.f32 0.0, %v2301
        %v2303 = vpop.f32.mrf.mxu0
        %v2304 = vadd.f32 0.0, %v2303
        %2305 = vmatmul.bf16.gmra.mxu0 %v1792
        %v2306 = vpop.f32.mrf.mxu0
        %v2307 = vadd.f32 0.0, %v2306
        %v2308 = vpop.f32.mrf.mxu0
        %v2309 = vadd.f32 0.0, %v2308
        %2310 = vmatmul.bf16.gmra.mxu0 %v2222
        %v2311 = vpop.f32.mrf.mxu0
        %v2312 = vadd.f32 0.0, %v2311
        %v2313 = vpop.f32.mrf.mxu0
        %v2314 = vadd.f32 0.0, %v2313
        %2315 = vdwg.mxu0
        %v2316 = vadd.f32 %v2176, %v2237
        %v2317 = vadd.f32 %v2177, %v2239
        %v2318 = vadd.f32 %v2178, %v2242
        %v2319 = vadd.f32 %v2179, %v2244
        %v2320 = vadd.f32 %v2180, %v2247
        %v2321 = vadd.f32 %v2181, %v2249
        %v2322 = vadd.f32 %v2182, %v2252
        %v2323 = vadd.f32 %v2183, %v2254
        %v2324 = vadd.f32 %v2184, %v2257
        %v2325 = vadd.f32 %v2185, %v2259
        %v2326 = vadd.f32 %v2186, %v2262
        %v2327 = vadd.f32 %v2187, %v2264
        %v2328 = vadd.f32 %v2188, %v2267
        %v2329 = vadd.f32 %v2189, %v2269
        %v2330 = vadd.f32 %v2190, %v2272
        %v2331 = vadd.f32 %v2191, %v2274
        %v2332 = vadd.f32 %v2192, %v2277
        %v2333 = vadd.f32 %v2193, %v2279
        %v2334 = vadd.f32 %v2194, %v2282
        %v2335 = vadd.f32 %v2195, %v2284
        %v2336 = vadd.f32 %v2196, %v2287
        %v2337 = vadd.f32 %v2197, %v2289
        %v2338 = vadd.f32 %v2198, %v2292
        %v2339 = vadd.f32 %v2199, %v2294
        %v2340 = vadd.f32 %v2200, %v2297
        %v2341 = vadd.f32 %v2201, %v2299
        %v2342 = vadd.f32 %v2202, %v2302
        %v2343 = vadd.f32 %v2203, %v2304
        %v2344 = vadd.f32 %v2204, %v2307
        %v2345 = vadd.f32 %v2205, %v2309
        %v2346 = vadd.f32 %v2206, %v2312
        %v2347 = vadd.f32 %v2207, %v2314
        %v2348 = vld [vmem:[%s2] sm:$0x1]
        %v2350 = vperm.slane %v2348, 0
        %v2352 = vadd.f32 %v2316, %v2350
        %v2353 = vadd.f32 %v2317, %v2350
        %v2354 = vadd.f32 %v2318, %v2350
        %v2355 = vadd.f32 %v2319, %v2350
        %v2356 = vadd.f32 %v2320, %v2350
        %v2357 = vadd.f32 %v2321, %v2350
        %v2358 = vadd.f32 %v2322, %v2350
        %v2359 = vadd.f32 %v2323, %v2350
        %v2360 = vadd.f32 %v2324, %v2350
        %v2361 = vadd.f32 %v2325, %v2350
        %v2362 = vadd.f32 %v2326, %v2350
        %v2363 = vadd.f32 %v2327, %v2350
        %v2364 = vadd.f32 %v2328, %v2350
        %v2365 = vadd.f32 %v2329, %v2350
        %v2366 = vadd.f32 %v2330, %v2350
        %v2367 = vadd.f32 %v2331, %v2350
        %v2368 = vadd.f32 %v2332, %v2350
        %v2369 = vadd.f32 %v2333, %v2350
        %v2370 = vadd.f32 %v2334, %v2350
        %v2371 = vadd.f32 %v2335, %v2350
        %v2372 = vadd.f32 %v2336, %v2350
        %v2373 = vadd.f32 %v2337, %v2350
        %v2374 = vadd.f32 %v2338, %v2350
        %v2375 = vadd.f32 %v2339, %v2350
        %v2376 = vadd.f32 %v2340, %v2350
        %v2377 = vadd.f32 %v2341, %v2350
        %v2378 = vadd.f32 %v2342, %v2350
        %v2379 = vadd.f32 %v2343, %v2350
        %v2380 = vadd.f32 %v2344, %v2350
        %v2381 = vadd.f32 %v2345, %v2350
        %v2382 = vadd.f32 %v2346, %v2350
        %v2383 = vadd.f32 %v2347, %v2350
        %v2384 = vmax.f32 %v2352, 0.0
        %v2385 = vmax.f32 %v2353, 0.0
        %v2386 = vmax.f32 %v2354, 0.0
        %v2387 = vmax.f32 %v2355, 0.0
        %v2388 = vmax.f32 %v2356, 0.0
        %v2389 = vmax.f32 %v2357, 0.0
        %v2390 = vmax.f32 %v2358, 0.0
        %v2391 = vmax.f32 %v2359, 0.0
        %v2392 = vmax.f32 %v2360, 0.0
        %v2393 = vmax.f32 %v2361, 0.0
        %v2394 = vmax.f32 %v2362, 0.0
        %v2395 = vmax.f32 %v2363, 0.0
        %v2396 = vmax.f32 %v2364, 0.0
        %v2397 = vmax.f32 %v2365, 0.0
        %v2398 = vmax.f32 %v2366, 0.0
        %v2399 = vmax.f32 %v2367, 0.0
        %v2400 = vmax.f32 %v2368, 0.0
        %v2401 = vmax.f32 %v2369, 0.0
        %v2402 = vmax.f32 %v2370, 0.0
        %v2403 = vmax.f32 %v2371, 0.0
        %v2404 = vmax.f32 %v2372, 0.0
        %v2405 = vmax.f32 %v2373, 0.0
        %v2406 = vmax.f32 %v2374, 0.0
        %v2407 = vmax.f32 %v2375, 0.0
        %v2408 = vmax.f32 %v2376, 0.0
        %v2409 = vmax.f32 %v2377, 0.0
        %v2410 = vmax.f32 %v2378, 0.0
        %v2411 = vmax.f32 %v2379, 0.0
        %v2412 = vmax.f32 %v2380, 0.0
        %v2413 = vmax.f32 %v2381, 0.0
        %v2414 = vmax.f32 %v2382, 0.0
        %v2415 = vmax.f32 %v2383, 0.0
        %v2416 = vld [vmem:[#allocation2] sm:$0x1]
        %v2417 = vadd.f32 %v2384, %v2385
        %v2418 = vadd.f32 %v2417, %v2386
        %v2419 = vadd.f32 %v2418, %v2387
        %v2420 = vadd.f32 %v2419, %v2388
        %v2421 = vadd.f32 %v2420, %v2389
        %v2422 = vadd.f32 %v2421, %v2390
        %v2423 = vadd.f32 %v2422, %v2391
        %v2424 = vadd.f32 %v2423, %v2392
        %v2425 = vadd.f32 %v2424, %v2393
        %v2426 = vadd.f32 %v2425, %v2394
        %v2427 = vadd.f32 %v2426, %v2395
        %v2428 = vadd.f32 %v2427, %v2396
        %v2429 = vadd.f32 %v2428, %v2397
        %v2430 = vadd.f32 %v2429, %v2398
        %v2431 = vadd.f32 %v2430, %v2399
        %v2432 = vadd.f32 %v2431, %v2400
        %v2433 = vadd.f32 %v2432, %v2401
        %v2434 = vadd.f32 %v2433, %v2402
        %v2435 = vadd.f32 %v2434, %v2403
        %v2436 = vadd.f32 %v2435, %v2404
        %v2437 = vadd.f32 %v2436, %v2405
        %v2438 = vadd.f32 %v2437, %v2406
        %v2439 = vadd.f32 %v2438, %v2407
        %v2440 = vadd.f32 %v2439, %v2408
        %v2441 = vadd.f32 %v2440, %v2409
        %v2442 = vadd.f32 %v2441, %v2410
        %v2443 = vadd.f32 %v2442, %v2411
        %v2444 = vadd.f32 %v2443, %v2412
        %v2445 = vadd.f32 %v2444, %v2413
        %v2446 = vadd.f32 %v2445, %v2414
        %v2447 = vadd.f32 %v2446, %v2415
        %v2448 = vrot.slane %v2447, 4
        %v2449 = vadd.f32 %v2447, %v2448
        %v2450 = vrot.slane %v2449, 2
        %v2451 = vadd.f32 %v2449, %v2450
        %v2452 = vrot.slane %v2451, 1
        %v2453 = vadd.f32 %v2451, %v2452
        %v2454 = vadd.f32 %v2416, %v2453
        %2455 = vst [vmem:[#allocation2] sm:$0x1] %v2454
        // Predicated region
        $region45: #{tpu_custom_call.1} parent=39 // pred_check
          %p2456 = pneg %p272
        $region46: #{tpu_custom_call.1} parent=39 // pred_check_branch
          %2458 = sbr.rel (%p2456) target = $region48
        $region47: #{tpu_custom_call.1} parent=39 // pred_region
          %v2459 = vld [vmem:[#allocation2] sm:$0x1]
          %v2460 = vmul.f32 %v2459, 0.00390625
          %2461 = vst [vmem:[%s259] sm:$0x1] %v2460
          %v2462 = vpack.c.bf16 %v2460, %v2460
          %v2463 = vld [vmem:[%s3] sm:$0xf]
          %v2464 = vld [vmem:[%s3 + $0x4] sm:$0xf]
          %v2465 = vld [vmem:[%s3 + $0x8] sm:$0xf]
          %v2466 = vld [vmem:[%s3 + $0xc] sm:$0xf]
          %v2467 = vld [vmem:[%s3 + $0x10] sm:$0xf]
          %v2468 = vld [vmem:[%s3 + $0x14] sm:$0xf]
          %v2469 = vld [vmem:[%s3 + $0x18] sm:$0xf]
          %v2470 = vld [vmem:[%s3 + $0x1c] sm:$0xf]
          %v2471 = vld [vmem:[%s3 + $0x20] sm:$0xf]
          %v2472 = vld [vmem:[%s3 + $0x24] sm:$0xf]
          %v2473 = vld [vmem:[%s3 + $0x28] sm:$0xf]
          %v2474 = vld [vmem:[%s3 + $0x2c] sm:$0xf]
          %v2475 = vld [vmem:[%s3 + $0x30] sm:$0xf]
          %v2476 = vld [vmem:[%s3 + $0x34] sm:$0xf]
          %v2477 = vld [vmem:[%s3 + $0x38] sm:$0xf]
          %v2478 = vld [vmem:[%s3 + $0x3c] sm:$0xf]
          %v2479 = vld [vmem:[%s4] sm:$0x1]
          %v2496 = vunpack.c.l.b16 %v2463
          %v2497 = vunpack.c.l.b16 %v2464
          %v2498 = vunpack.c.l.b16 %v2465
          %v2499 = vunpack.c.l.b16 %v2466
          %v2500 = vunpack.c.l.b16 %v2467
          %v2501 = vunpack.c.l.b16 %v2468
          %v2502 = vunpack.c.l.b16 %v2469
          %v2503 = vunpack.c.l.b16 %v2470
          %v2504 = vunpack.c.l.b16 %v2471
          %v2505 = vunpack.c.l.b16 %v2472
          %v2506 = vunpack.c.l.b16 %v2473
          %v2507 = vunpack.c.l.b16 %v2474
          %v2508 = vunpack.c.l.b16 %v2475
          %v2509 = vunpack.c.l.b16 %v2476
          %v2510 = vunpack.c.l.b16 %v2477
          %v2511 = vunpack.c.l.b16 %v2478
          %v2512 = vpack.c.b16 %v2497, %v2496
          %v2513 = vpack.c.b16 %v2499, %v2498
          %v2514 = vpack.c.b16 %v2501, %v2500
          %v2515 = vpack.c.b16 %v2503, %v2502
          %v2516 = vpack.c.b16 %v2505, %v2504
          %v2517 = vpack.c.b16 %v2507, %v2506
          %v2518 = vpack.c.b16 %v2509, %v2508
          %v2519 = vpack.c.b16 %v2511, %v2510
          %2528 = vmatpush.bf16.msra.mxu0 %v2519
          %2529 = vmatpush.bf16.msra.mxu0 %v2518
          %2530 = vmatpush.bf16.msra.mxu0 %v2517
          %2531 = vmatpush.bf16.msra.mxu0 %v2516
          %2532 = vmatpush.bf16.msra.mxu0 %v2515
          %2533 = vmatpush.bf16.msra.mxu0 %v2514
          %2534 = vmatpush.bf16.msra.mxu0 %v2513
          %2535 = vmatpush.bf16.msra.mxu0 %v2512
          %2536 = vmatmul.bf16.gmra.mxu0 %v2462
          %v2537 = vpop.f32.mrf.mxu0
          %v2538 = vadd.f32 %v2479, %v2537
          %v2539 = vpop.f32.mrf.mxu0
          %2540 = vdwg.mxu0
          %2541 = vst [vmem:[%s265] sm:$0x1] %v2538
        $region48: #{tpu_custom_call.1} parent=39 // pred_fallthru
          _
        %s2542 = sand.u32 %s154, 1
        %s2543 = scalar_lea.sflag [#allocation4], %s2542
        %s2544 = sand.u32 %s154, 1
        %s2545 = scalar_lea.vmem [#allocation3], %s2544
        %s2546 = sand.u32 %s180, 1
        %s2547 = scalar_lea.sflag [#allocation6], %s2546
        %s2548 = sand.u32 %s180, 1
        %s2549 = scalar_lea.vmem [#allocation5], %s2548
        // Predicated region
        $region49: #{tpu_custom_call.1} parent=39 // pred_check
          %p2550 = pneg %p164
        $region50: #{tpu_custom_call.1} parent=39 // pred_check_branch
          %2552 = sbr.rel (%p2550) target = $region52
        $region51: #{tpu_custom_call.1} parent=39 // pred_region
          %2554 = vsyncadd %s2543, 0
          %s2555 = scalar_lea.hbm %s5, %s28
          %s2557 = sshll.u32 %s2545, 4
          %s2558 = int_to_ptr.vmem [resolvable:$true] %s2557
          %s2559 = sshll.u32 %s2555, 4
          %s2560 = int_to_ptr.hbm [resolvable:$true] %s2559
          %2562 = dma.vmem_to_hbm [thread:$0]  %s2558, 16, %s2560, %s2543
        $region52: #{tpu_custom_call.1} parent=39 // pred_fallthru
          _
        // Predicated region
        $region53: #{tpu_custom_call.1} parent=39 // pred_check
          %p2563 = pneg %p190
        $region54: #{tpu_custom_call.1} parent=39 // pred_check_branch
          %2565 = sbr.rel (%p2563) target = $region56
        $region55: #{tpu_custom_call.1} parent=39 // pred_region
          %2567 = vsyncadd %s2547, 0
          %s2568 = scalar_lea.hbm %s6, %s28
          %s2570 = sshll.u32 %s2549, 4
          %s2571 = int_to_ptr.vmem [resolvable:$true] %s2570
          %s2572 = sshll.u32 %s2568, 4
          %s2573 = int_to_ptr.hbm [resolvable:$true] %s2572
          %2575 = dma.vmem_to_hbm [thread:$0]  %s2571, 16, %s2573, %s2547
        $region56: #{tpu_custom_call.1} parent=39 // pred_fallthru
          _
      $region40: #{tpu_custom_call.1} parent=5 // pred_fallthru
        _
      %p2576 = scmp.le.s32.totalorder 2, %s19
      // Predicated region
      $region57: #{tpu_custom_call.1} parent=5 // pred_check
        %p2577 = pneg %p2576
      $region58: #{tpu_custom_call.1} parent=5 // pred_check_branch
        %2579 = sbr.rel (%p2577) target = $region60
      $region59: #{tpu_custom_call.1} parent=5 // pred_region
        %s2580 = ssub.s32 %s19, 2
        // Predicated region
        $region61: #{tpu_custom_call.1} parent=59 // pred_check
          %p2581 = pneg %p170
        $region62: #{tpu_custom_call.1} parent=59 // pred_check_branch
          %2583 = sbr.rel (%p2581) target = $region64
        $region63: #{tpu_custom_call.1} parent=59 // pred_region
          %s2584 = sand.u32 %s155, 1
          %s2585 = scalar_lea.sflag [#allocation4], %s2584
          %s2586 = sand.u32 %s155, 1
          %s2587 = scalar_lea.vmem [#allocation3], %s2586
          %2589 = dma.done %s2585, 16
        $region64: #{tpu_custom_call.1} parent=59 // pred_fallthru
          _
        // Predicated region
        $region65: #{tpu_custom_call.1} parent=59 // pred_check
          %p2590 = pneg %p196
        $region66: #{tpu_custom_call.1} parent=59 // pred_check_branch
          %2592 = sbr.rel (%p2590) target = $region68
        $region67: #{tpu_custom_call.1} parent=59 // pred_region
          %s2593 = sand.u32 %s181, 1
          %s2594 = scalar_lea.sflag [#allocation6], %s2593
          %s2595 = sand.u32 %s181, 1
          %s2596 = scalar_lea.vmem [#allocation5], %s2595
          %2598 = dma.done %s2594, 16
        $region68: #{tpu_custom_call.1} parent=59 // pred_fallthru
          _
      $region60: #{tpu_custom_call.1} parent=5 // pred_fallthru
        _
    $region6: #{tpu_custom_call.1} parent=1 // loop_footer
      %s23 = sadd.s32 1, %s19
    $region7: #{tpu_custom_call.1} parent=1 // loop_footer_branch
      %18 = sbr.rel target = $region3
    $region8: #{tpu_custom_call.1} parent=1 // loop_exit
      _
    %2599 = vsyncpa [#allocation4], 1
    %s2600 = scalar_lea.sflag [#allocation4], 1
    %2601 = vsyncpa %s2600, 1
    %2602 = vsyncpa [#allocation6], 1
    %s2603 = scalar_lea.sflag [#allocation6], 1
    %2604 = vsyncpa %s2603, 1

</llo_original>
